<compile_context>
chip_gen: v7x
topology: tpu7x:2x2x1
jax: 0.10.0
libtpu: 0.0.40
codegen_flags: <defaults>
</compile_context>

<pallas_src>
import numpy as np
import jax
import jax.numpy as jnp
from jax.experimental import pallas as pl
from jax.experimental.pallas import tpu as pltpu

# ---------------------------------------------------------------------------
# Model dimensions implied by the module
# ---------------------------------------------------------------------------
M = 4                                   # state dim
N = 2                                   # observation dim
SW = 11                                 # sliding-window length
OUT_MULT = 2                            # args.out_mult_KNet
HID_FC2 = (M * M + N * N) * OUT_MULT    # 40
NM = N * M                              # 8

CONV_X_CH = [2 * M, 16, 32, 64, 128, 256]
CONV_Y_CH = [2 * N, 4, 8, 16, 32, 64]


def _round_up(x, m):
    return ((x + m - 1) // m) * m


# Fused (block-diagonal) conv stack: x-branch and y-branch channels concatenated on the
# lane axis ([x | y | zero-pad]); channel counts padded to multiples of 8 so every slab
# slice is 8-row aligned.
C_IN_PAD = _round_up(CONV_X_CH[0] + CONV_Y_CH[0], 8)                     # 16 (12 real + 4 pad)
CONV_COUT = [_round_up(cx + cy, 8)
             for cx, cy in zip(CONV_X_CH[1:], CONV_Y_CH[1:])]            # [24, 40, 80, 160, 320]
CONV_CIN = [C_IN_PAD] + CONV_COUT[:-1]                                   # [16, 24, 40, 80, 160]
FC01_IN = CONV_COUT[-1]                                                  # 320 (= 256 x + 64 y)
FC01_OUT = _round_up(M * M + N * N, 8)                                   # 24 (20 real + 4 pad)
KG_PAD = 128                                                             # lane-dense output width

# Row layout of the packed weight slab (all 13 weight matrices in one array).
_off = 0
CONV_ROW_OFFS = []
for _cin in CONV_CIN:
    CONV_ROW_OFFS.append((_off, _off + _cin))       # (tap-0 row offset, tap-1 row offset)
    _off += 2 * _cin
FC01_OFF = _off
_off += FC01_IN
FC2A_OFF = _off
_off += FC01_OUT
FC2B_OFF = _off
_off += HID_FC2
W_SLAB_ROWS = _round_up(_off, 8)                                         # 1024
W_SLAB_COLS = max(CONV_COUT)                                             # 320
B_SLAB_ROWS = 8                                                          # one bias row per layer

# Batch-tile granularity: 16 keeps every sublane slice aligned for f32 AND packed bf16.
_TILE_ALIGN = 16


# ---------------------------------------------------------------------------
# Pallas kernel: fused KGain_step (conv_x_1..5 + conv_y_1..5 + FC0 + FC1 + FC2)
# ---------------------------------------------------------------------------
def _kgain_kernel(x_ref, w_ref, b_ref, out_ref):
    """One batch tile of KGain_step.

    x_ref:   (1, SW*BT, C_IN_PAD) f32 activation slab; row index = l*BT + b, so every
             conv tap / pool shift is a static, BT-aligned sublane slice and the pool
             never mixes adjacent batch elements.
    w_ref:   (W_SLAB_ROWS, W_SLAB_COLS) packed block-diagonal weights (bf16 default / f32).
             Its dtype is the MXU operand dtype; accumulation is always f32.
    b_ref:   (B_SLAB_ROWS, W_SLAB_COLS) packed biases, f32, one row per layer.
    out_ref: (BT, KG_PAD) f32; columns >= n*m are zero padding (lane-dense store).
    """
    bt = out_ref.shape[0]
    cdt = w_ref.dtype

    def mxu(a, w):
        # MXU matmul with f32 accumulation; operands already in the compute dtype.
        return jnp.dot(a, w, preferred_element_type=jnp.float32)

    act = x_ref[0]                                 # (SW*BT, C_IN_PAD), f32
    n_pos = SW                                     # current number of length positions

    # Five fused Conv1d(k=2, s=1) + ReLU + MaxPool1d(k=2, s=1) blocks (x & y branches fused
    # block-diagonally; zero-padded channels stay exactly zero through every block).
    # Each block = 2 matmuls over the whole (n_pos*BT)-row slab + 1 bias + 1 ReLU + 1 max.
    for li in range(5):
        cin, cout = CONV_CIN[li], CONV_COUT[li]
        r0, r1 = CONV_ROW_OFFS[li]
        w0 = w_ref[r0:r0 + cin, 0:cout]            # tap k = 0
        w1 = w_ref[r1:r1 + cin, 0:cout]            # tap k = 1
        b = b_ref[li:li + 1, 0:cout]               # (1, cout), f32 -> one broadcast per layer
        act_c = act.astype(cdt)                    # cast the dot operands once per layer
        a0 = act_c[0:(n_pos - 1) * bt, :]          # positions 0 .. n_pos-2
        a1 = act_c[bt:n_pos * bt, :]               # positions 1 .. n_pos-1
        conv = jnp.maximum(mxu(a0, w0) + mxu(a1, w1) + b, 0.0)     # Conv + bias + ReLU, f32
        # MaxPool along L only: rows l*BT+b and (l+1)*BT+b belong to the SAME batch element.
        n_pos -= 2
        act = jnp.maximum(conv[0:n_pos * bt, :], conv[bt:(n_pos + 1) * bt, :])

    feat = act                                     # (BT, 320) = [x: 256 | y: 64], f32

    # FC0 (256 -> m^2) and FC1 (64 -> n^2) fused block-diagonally, + ReLU.
    h01 = jnp.maximum(
        mxu(feat.astype(cdt), w_ref[FC01_OFF:FC01_OFF + FC01_IN, 0:FC01_OUT])
        + b_ref[5:6, 0:FC01_OUT], 0.0)             # (BT, 24); cols 20..23 stay 0

    # FC2 layer 1 (+ReLU) on cat((FC0_out, FC1_out)) -- the fused layout already has this order.
    h2 = jnp.maximum(
        mxu(h01.astype(cdt), w_ref[FC2A_OFF:FC2A_OFF + FC01_OUT, 0:HID_FC2])
        + b_ref[6:7, 0:HID_FC2], 0.0)              # (BT, 40)

    # FC2 layer 2; output padded to 128 lanes (zero weight cols / bias) -> unmasked stores.
    kg = (mxu(h2.astype(cdt), w_ref[FC2B_OFF:FC2B_OFF + HID_FC2, 0:KG_PAD])
          + b_ref[7:8, 0:KG_PAD])                  # (BT, 128); cols >= n*m are 0

    out_ref[...] = kg


def _auto_b_tile(B):
    """Batch-tile heuristic: snug for tiny recurrent batches, >=2 grid steps mid-size
    (feeds both v7x TensorCores via the 'parallel' axis), 256 for large batches."""
    if B <= _TILE_ALIGN:
        return _TILE_ALIGN
    if B <= 512:
        return _round_up((B + 1) // 2, _TILE_ALIGN)
    return 256


def kgain_step_pallas(x_sw_nlc, y_sw_nlc, w_slab, b_slab, *, b_tile=None):
    """x_sw_nlc: (B, SW, 2m); y_sw_nlc: (B, SW, 2n).  Returns (B, n*m) f32.

    The MXU-operand dtype is w_slab.dtype (bf16 by default -- native on v5e/v6e/v7x);
    accumulation and all element-wise math stay f32.  b_tile=None picks an auto tile
    (multiple of 16); pass an explicit multiple of 16 to override.
    """
    B = x_sw_nlc.shape[0]
    bt = _round_up(b_tile, _TILE_ALIGN) if b_tile else _auto_b_tile(B)
    b_pad = _round_up(B, bt)
    n_tiles = b_pad // bt

    # Fused, channel-padded input; batch is zero-padded AFTER any host-side dim-0
    # normalization (done by the caller), so pad rows never perturb real rows.
    xin = jnp.concatenate(
        [x_sw_nlc.astype(jnp.float32), y_sw_nlc.astype(jnp.float32),
         jnp.zeros((B, SW, C_IN_PAD - 2 * M - 2 * N), jnp.float32)], axis=-1)   # (B, SW, C)
    if b_pad != B:
        xin = jnp.pad(xin, ((0, b_pad - B), (0, 0), (0, 0)))
    # (b_pad, SW, C) -> (n_tiles, SW*bt, C): within a tile, row = l*bt + b (L-major slab).
    xin = xin.reshape(n_tiles, bt, SW, C_IN_PAD)
    xin = jnp.transpose(xin, (0, 2, 1, 3)).reshape(n_tiles, SW * bt, C_IN_PAD)

    out = pl.pallas_call(
        _kgain_kernel,
        out_shape=jax.ShapeDtypeStruct((b_pad, KG_PAD), jnp.float32),
        grid_spec=pltpu.PrefetchScalarGridSpec(
            num_scalar_prefetch=0,
            grid=(n_tiles,),
            in_specs=[
                pl.BlockSpec((1, SW * bt, C_IN_PAD), lambda i: (i, 0, 0)),
                # Grid-invariant index maps: the weight/bias slabs are DMA'd once and
                # stay resident across grid steps (no re-DMA of invariant operands).
                pl.BlockSpec((W_SLAB_ROWS, W_SLAB_COLS), lambda i: (0, 0)),
                pl.BlockSpec((B_SLAB_ROWS, W_SLAB_COLS), lambda i: (0, 0)),
            ],
            out_specs=pl.BlockSpec((bt, KG_PAD), lambda i: (i, 0)),
        ),
        compiler_params=pltpu.CompilerParams(
            dimension_semantics=("parallel",)),
    )(xin, w_slab, b_slab)

    return out[:B, :NM]


# ---------------------------------------------------------------------------
# Pure-JAX reference of KGain_step (unfused, per-branch weights) for correctness checks
# ---------------------------------------------------------------------------
def kgain_step_ref(x_sw_nlc, y_sw_nlc, plist, compute_dtype=jnp.float32):
    wx = plist[0:10]
    wy = plist[10:20]
    w0, b0, w1, b1, w2a, b2a, w2b, b2b = plist[20:28]
    cdt = compute_dtype

    def mm(a, w):
        return jnp.einsum('blc,cd->bld', a.astype(cdt), w.astype(cdt),
                          preferred_element_type=jnp.float32)

    def fcdot(a, w):
        return jnp.dot(a.astype(cdt), w.astype(cdt), preferred_element_type=jnp.float32)

    def conv_block(x, w, b):
        cin = x.shape[2]
        out = mm(x[:, :-1, :], w[:cin, :]) + mm(x[:, 1:, :], w[cin:, :]) + b[None]
        out = jnp.maximum(out, 0.0)
        return jnp.maximum(out[:, :-1, :], out[:, 1:, :])

    x = x_sw_nlc
    for i in range(5):
        x = conv_block(x, wx[2 * i], wx[2 * i + 1])
    y = y_sw_nlc
    for i in range(5):
        y = conv_block(y, wy[2 * i], wy[2 * i + 1])

    xf = x[:, 0, :]     # (B, 256)
    yf = y[:, 0, :]     # (B, 64)
    fc0 = jnp.maximum(fcdot(xf, w0) + b0, 0.0)
    fc1 = jnp.maximum(fcdot(yf, w1) + b1, 0.0)
    cat = jnp.concatenate([fc0, fc1], axis=1)
    h = jnp.maximum(fcdot(cat, w2a) + b2a, 0.0)
    return fcdot(h, w2b) + b2b


# ---------------------------------------------------------------------------
# Parameter init (deterministic, synthetic).  Initialized in PyTorch layouts, converted
# to matmul form (2*Cin, Cout) conv weights / (in, out) FC weights; then packed into slabs.
# ---------------------------------------------------------------------------
def init_params(key):
    params = []
    keys = iter(jax.random.split(key, 64))

    def nrm(shape, scale=0.1):
        return scale * jax.random.normal(next(keys), shape, dtype=jnp.float32)

    def add_conv(cin, cout):
        w = nrm((cout, cin, 2))                    # PyTorch Conv1d weight (Cout, Cin, K)
        b = nrm((cout,))
        w_mat = jnp.concatenate([w[:, :, 0], w[:, :, 1]], axis=1).T   # (2*Cin, Cout)
        params.extend([w_mat, b.reshape(1, cout)])

    for cin, cout in zip(CONV_X_CH[:-1], CONV_X_CH[1:]):
        add_conv(cin, cout)
    for cin, cout in zip(CONV_Y_CH[:-1], CONV_Y_CH[1:]):
        add_conv(cin, cout)

    def add_fc(din, dout):
        w = nrm((dout, din))                       # PyTorch Linear weight (out, in)
        b = nrm((dout,))
        params.extend([w.T, b.reshape(1, dout)])

    add_fc(256, M * M)                 # FC0
    add_fc(64, N * N)                  # FC1
    add_fc(M * M + N * N, HID_FC2)     # FC2 layer 1
    add_fc(HID_FC2, N * M)             # FC2 layer 2
    return params


def pack_params(plist, compute_dtype=jnp.bfloat16):
    """Pack the 28 per-branch params into one weight slab + one bias slab (block-diagonal).

    The weight slab is pre-cast to `compute_dtype` ONCE here (bf16 default -- native MXU
    operand dtype on v5e/v6e/v7x); biases stay f32 (f32 accumulate / element-wise math).
    """
    wx = plist[0:10]
    wy = plist[10:20]
    w0, b0, w1, b1, w2a, b2a, w2b, b2b = plist[20:28]

    W = np.zeros((W_SLAB_ROWS, W_SLAB_COLS), np.float32)
    Bm = np.zeros((B_SLAB_ROWS, W_SLAB_COLS), np.float32)

    # Fused conv layers: per-layer channel layout is [x_out | y_out | zero-pad].
    for li in range(5):
        wxl = np.asarray(wx[2 * li])
        bxl = np.asarray(wx[2 * li + 1])
        wyl = np.asarray(wy[2 * li])
        byl = np.asarray(wy[2 * li + 1])
        cxi, cxo = CONV_X_CH[li], CONV_X_CH[li + 1]
        cyi, cyo = CONV_Y_CH[li], CONV_Y_CH[li + 1]
        r0, r1 = CONV_ROW_OFFS[li]
        # tap k = 0
        W[r0:r0 + cxi, 0:cxo] = wxl[:cxi]
        W[r0 + cxi:r0 + cxi + cyi, cxo:cxo + cyo] = wyl[:cyi]
        # tap k = 1
        W[r1:r1 + cxi, 0:cxo] = wxl[cxi:]
        W[r1 + cxi:r1 + cxi + cyi, cxo:cxo + cyo] = wyl[cyi:]
        Bm[li, 0:cxo] = bxl[0]
        Bm[li, cxo:cxo + cyo] = byl[0]

    # FC0 (256 -> m^2) and FC1 (64 -> n^2), fused block-diagonally into FC01.
    W[FC01_OFF:FC01_OFF + CONV_X_CH[-1], 0:M * M] = np.asarray(w0)
    W[FC01_OFF + CONV_X_CH[-1]:FC01_OFF + CONV_X_CH[-1] + CONV_Y_CH[-1],
      M * M:M * M + N * N] = np.asarray(w1)
    Bm[5, 0:M * M] = np.asarray(b0)[0]
    Bm[5, M * M:M * M + N * N] = np.asarray(b1)[0]

    # FC2 layer 1 (cat order = [FC0_out, FC1_out], matching the fused layout; pad rows zero).
    W[FC2A_OFF:FC2A_OFF + (M * M + N * N), 0:HID_FC2] = np.asarray(w2a)
    Bm[6, 0:HID_FC2] = np.asarray(b2a)[0]

    # FC2 layer 2; columns >= n*m stay zero (lane-dense padded output).
    W[FC2B_OFF:FC2B_OFF + HID_FC2, 0:N * M] = np.asarray(w2b)
    Bm[7, 0:N * M] = np.asarray(b2b)[0]

    return jnp.asarray(W).astype(compute_dtype), jnp.asarray(Bm)


# ---------------------------------------------------------------------------
# Full KalmanCNN.forward (functional; recurrent state carried explicitly)
# ---------------------------------------------------------------------------
def normalize_dim0(x, eps=1e-12):
    # torch.nn.functional.normalize(x, p=2, dim=0, eps=eps)
    nrm = jnp.sqrt(jnp.sum(x * x, axis=0, keepdims=True))
    return x / jnp.maximum(nrm, eps)


def kalman_cnn_forward(state, packed, const, y, t, *, b_tile=None):
    w_slab, b_slab = packed
    t_fa, v_fa, H = const["t_fa"], const["v_fa"], const["H"]
    dt = t_fa[t + 1001] - t_fa[t + 1000]
    v = v_fa[t + 1000]
    F = (jnp.eye(M, dtype=jnp.float32)
         .at[0, 1].set(-dt)
         .at[0, 2].set(-v * dt)
         .at[0, 3].set(-(v ** 2) * dt))

    m1x_post = state["m1x_posterior"]                  # (B, m)
    m1x_prior = m1x_post @ F.T                         # bmm(F, x) per batch
    m1y = m1x_prior @ H.T                              # h(x) = H x  (B, n)

    obs_diff = normalize_dim0(y - state["y_previous"])
    obs_innov_diff = normalize_dim0(y - m1y)
    fw_evol_diff = normalize_dim0(m1x_post - state["m1x_posterior_previous"])
    fw_update_diff = normalize_dim0(m1x_post - state["m1x_prior_previous"])

    def shift(buf, new):                               # sliding-window shift + append
        return jnp.concatenate([buf[:, :, 1:], new[:, :, None]], axis=2)

    y_obs = shift(state["y_sw_obs_diff"], obs_diff)
    y_innov = shift(state["y_sw_obs_innov_diff"], obs_innov_diff)
    x_evol = shift(state["x_sw_fw_evol_diff"], fw_evol_diff)
    x_upd = shift(state["x_sw_fw_update_diff"], fw_update_diff)

    y_sw = jnp.concatenate([y_obs, y_innov], axis=1)   # (B, 2n, SW) -- NCL, as in PyTorch
    x_sw = jnp.concatenate([x_evol, x_upd], axis=1)    # (B, 2m, SW)

    x_sw_nlc = jnp.transpose(x_sw, (0, 2, 1))          # NCL -> NLC (channels on lanes)
    y_sw_nlc = jnp.transpose(y_sw, (0, 2, 1))

    kg = kgain_step_pallas(x_sw_nlc, y_sw_nlc, w_slab, b_slab, b_tile=b_tile)   # (B, n*m)
    kgain = kg.reshape(-1, M, N)

    dy = y - m1y                                       # (B, n)
    inov = jnp.einsum('bmn,bn->bm', kgain, dy)
    m1x_post_new = m1x_prior + inov

    new_state = dict(
        m1x_posterior=m1x_post_new,
        m1x_posterior_previous=m1x_post,
        m1x_prior_previous=m1x_prior,
        y_previous=y,
        y_sw_obs_diff=y_obs,
        y_sw_obs_innov_diff=y_innov,
        x_sw_fw_evol_diff=x_evol,
        x_sw_fw_update_diff=x_upd,
    )
    return m1x_post_new, kg, x_sw_nlc, y_sw_nlc, new_state


# ---------------------------------------------------------------------------
if __name__ == "__main__":
    B = 2   # args.n_batch
    key = jax.random.PRNGKey(0)
    ks = jax.random.split(key, 16)

    plist = init_params(ks[0])
    w_bf16, b_slab = pack_params(plist, compute_dtype=jnp.bfloat16)   # default fast path
    w_f32, _ = pack_params(plist, compute_dtype=jnp.float32)          # f32 MXU-operand path

    # TODO(synk): InitSW / InitSequence (Kalman-filter warmup with torch.inverse) is state
    # initialization, not the forward pass; the recurrent state is initialized synthetically.
    t_fa = jnp.linspace(0.0, 12.0, 1200).astype(jnp.float32)
    v_fa = 0.01 * jnp.arange(1200, dtype=jnp.float32)
    H = 0.1 * jax.random.normal(ks[1], (N, M), dtype=jnp.float32)   # linear h(x) = H x
    const = dict(t_fa=t_fa, v_fa=v_fa, H=H)

    state = dict(
        m1x_posterior=jax.random.normal(ks[2], (B, M), dtype=jnp.float32),
        m1x_posterior_previous=jax.random.normal(ks[3], (B, M), dtype=jnp.float32),
        m1x_prior_previous=jax.random.normal(ks[4], (B, M), dtype=jnp.float32),
        y_previous=jax.random.normal(ks[5], (B, N), dtype=jnp.float32),
        y_sw_obs_diff=jax.random.normal(ks[6], (B, N, SW), dtype=jnp.float32),
        y_sw_obs_innov_diff=jax.random.normal(ks[7], (B, N, SW), dtype=jnp.float32),
        x_sw_fw_evol_diff=jax.random.normal(ks[8], (B, M, SW), dtype=jnp.float32),
        x_sw_fw_update_diff=jax.random.normal(ks[9], (B, M, SW), dtype=jnp.float32),
    )

    y_t = jax.random.normal(ks[10], (B, N), dtype=jnp.float32)
    t = 0

    # --- default bf16 MXU-operand path (native on v5e/v6e/v7x; f32 accumulate/elementwise) --
    post, kg, x_sw_nlc, y_sw_nlc, _ = kalman_cnn_forward(
        state, (w_bf16, b_slab), const, y_t, t)
    post = jax.block_until_ready(post)
    kg_ref_bf16 = kgain_step_ref(x_sw_nlc, y_sw_nlc, plist, compute_dtype=jnp.bfloat16)
    np.testing.assert_allclose(np.asarray(kg), np.asarray(kg_ref_bf16), rtol=2e-2, atol=3e-3)
    assert post.shape == (B, M)

    # --- f32 MXU-operand path -----------------------------------------------------------
    kg_f32 = jax.block_until_ready(
        kgain_step_pallas(x_sw_nlc, y_sw_nlc, w_f32, b_slab))
    kg_ref = kgain_step_ref(x_sw_nlc, y_sw_nlc, plist)
    np.testing.assert_allclose(np.asarray(kg_f32), np.asarray(kg_ref), rtol=1e-2, atol=1e-3)

    # --- multi-tile grid path (auto tile -> 16-row tiles, 2 grid steps, padded remainder) --
    B2 = 18
    x2 = jax.random.normal(ks[11], (B2, SW, 2 * M), dtype=jnp.float32)
    y2 = jax.random.normal(ks[12], (B2, SW, 2 * N), dtype=jnp.float32)
    kg2 = jax.block_until_ready(kgain_step_pallas(x2, y2, w_f32, b_slab))
    kg2_ref = kgain_step_ref(x2, y2, plist)
    np.testing.assert_allclose(np.asarray(kg2), np.asarray(kg2_ref), rtol=1e-2, atol=2e-3)

    # --- explicit large tile (single padded tile, bf16 operands) --------------------------
    kg3 = jax.block_until_ready(kgain_step_pallas(x2, y2, w_bf16, b_slab, b_tile=256))
    kg3_ref = kgain_step_ref(x2, y2, plist, compute_dtype=jnp.bfloat16)
    np.testing.assert_allclose(np.asarray(kg3), np.asarray(kg3_ref), rtol=2e-2, atol=3e-3)

    print("KERNEL_OK")
</pallas_src>

<mosaic_0001>
module attributes {stable_mosaic.version = 11 : i64} {
  func.func @_kgain_kernel(%arg0: i32, %arg1: memref<1x176x16xf32, #tpu.memory_space<vmem>>, %arg2: memref<1024x320xbf16, #tpu.memory_space<vmem>>, %arg3: memref<8x320xf32, #tpu.memory_space<vmem>>, %arg4: memref<16x128xf32, #tpu.memory_space<vmem>>) attributes {dimension_semantics = [#tpu.dimension_semantics<parallel>], iteration_bounds = array<i64: 1>, scalar_prefetch = 0 : i64, scratch_operands = 0 : i64, tpu.core_type = #tpu.core_type<tc>, window_params = [{transform_indices = @transform_0, window_bounds = array<i64: 1, 176, 16>}, {pipeline_mode = #tpu.pipeline_mode<synchronous>, transform_indices = @transform_1, window_bounds = array<i64: 1024, 320>}, {pipeline_mode = #tpu.pipeline_mode<synchronous>, transform_indices = @transform_2, window_bounds = array<i64: 8, 320>}, {transform_indices = @transform_3, window_bounds = array<i64: 16, 128>}]} {
    %c0 = arith.constant 0 : index
    %c0_0 = arith.constant 0 : index
    %c0_1 = arith.constant 0 : index
    %0 = vector.load %arg1[%c0, %c0_0, %c0_1] : memref<1x176x16xf32, #tpu.memory_space<vmem>>, vector<1x176x16xf32>
    %1 = vector.shape_cast %0 : vector<1x176x16xf32> to vector<176x16xf32>
    %c0_2 = arith.constant 0 : index
    %c0_3 = arith.constant 0 : index
    %2 = vector.load %arg2[%c0_2, %c0_3] : memref<1024x320xbf16, #tpu.memory_space<vmem>>, vector<16x24xbf16>
    %c16 = arith.constant 16 : index
    %c0_4 = arith.constant 0 : index
    %3 = vector.load %arg2[%c16, %c0_4] : memref<1024x320xbf16, #tpu.memory_space<vmem>>, vector<16x24xbf16>
    %c0_5 = arith.constant 0 : index
    %c0_6 = arith.constant 0 : index
    %4 = vector.load %arg3[%c0_5, %c0_6] : memref<8x320xf32, #tpu.memory_space<vmem>>, vector<1x24xf32>
    %5 = arith.truncf %1 : vector<176x16xf32> to vector<176x16xbf16>
    %6 = vector.extract_strided_slice %5 {offsets = [0, 0], sizes = [160, 16], strides = [1, 1]} : vector<176x16xbf16> to vector<160x16xbf16>
    %7 = vector.extract_strided_slice %5 {offsets = [16, 0], sizes = [160, 16], strides = [1, 1]} : vector<176x16xbf16> to vector<160x16xbf16>
    %cst = arith.constant dense<0.000000e+00> : vector<160x24xf32>
    %8 = tpu.matmul %6, %2, %cst {dimension_numbers = #tpu.dot_dimension_numbers<[1], [0], [0], [1], [0, 0, 1, 1], [], []>} : vector<160x16xbf16>, vector<16x24xbf16>, vector<160x24xf32> -> vector<160x24xf32>
    %cst_7 = arith.constant dense<0.000000e+00> : vector<160x24xf32>
    %9 = tpu.matmul %7, %3, %cst_7 {dimension_numbers = #tpu.dot_dimension_numbers<[1], [0], [0], [1], [0, 0, 1, 1], [], []>} : vector<160x16xbf16>, vector<16x24xbf16>, vector<160x24xf32> -> vector<160x24xf32>
    %10 = arith.addf %8, %9 : vector<160x24xf32>
    %11 = vector.broadcast %4 : vector<1x24xf32> to vector<160x24xf32>
    %12 = arith.addf %10, %11 : vector<160x24xf32>
    %cst_8 = arith.constant 0.000000e+00 : f32
    %13 = vector.broadcast %cst_8 : f32 to vector<160x24xf32>
    %14 = arith.maximumf %12, %13 : vector<160x24xf32>
    %15 = vector.extract_strided_slice %14 {offsets = [0, 0], sizes = [144, 24], strides = [1, 1]} : vector<160x24xf32> to vector<144x24xf32>
    %16 = vector.extract_strided_slice %14 {offsets = [16, 0], sizes = [144, 24], strides = [1, 1]} : vector<160x24xf32> to vector<144x24xf32>
    %17 = arith.maximumf %15, %16 : vector<144x24xf32>
    %c32 = arith.constant 32 : index
    %c0_9 = arith.constant 0 : index
    %18 = vector.load %arg2[%c32, %c0_9] : memref<1024x320xbf16, #tpu.memory_space<vmem>>, vector<24x40xbf16>
    %c56 = arith.constant 56 : index
    %c0_10 = arith.constant 0 : index
    %19 = vector.load %arg2[%c56, %c0_10] : memref<1024x320xbf16, #tpu.memory_space<vmem>>, vector<24x40xbf16>
    %c1 = arith.constant 1 : index
    %c0_11 = arith.constant 0 : index
    %20 = vector.load %arg3[%c1, %c0_11] : memref<8x320xf32, #tpu.memory_space<vmem>>, vector<1x40xf32>
    %21 = arith.truncf %17 : vector<144x24xf32> to vector<144x24xbf16>
    %22 = vector.extract_strided_slice %21 {offsets = [0, 0], sizes = [128, 24], strides = [1, 1]} : vector<144x24xbf16> to vector<128x24xbf16>
    %23 = vector.extract_strided_slice %21 {offsets = [16, 0], sizes = [128, 24], strides = [1, 1]} : vector<144x24xbf16> to vector<128x24xbf16>
    %cst_12 = arith.constant dense<0.000000e+00> : vector<128x40xf32>
    %24 = tpu.matmul %22, %18, %cst_12 {dimension_numbers = #tpu.dot_dimension_numbers<[1], [0], [0], [1], [0, 0, 1, 1], [], []>} : vector<128x24xbf16>, vector<24x40xbf16>, vector<128x40xf32> -> vector<128x40xf32>
    %cst_13 = arith.constant dense<0.000000e+00> : vector<128x40xf32>
    %25 = tpu.matmul %23, %19, %cst_13 {dimension_numbers = #tpu.dot_dimension_numbers<[1], [0], [0], [1], [0, 0, 1, 1], [], []>} : vector<128x24xbf16>, vector<24x40xbf16>, vector<128x40xf32> -> vector<128x40xf32>
    %26 = arith.addf %24, %25 : vector<128x40xf32>
    %27 = vector.broadcast %20 : vector<1x40xf32> to vector<128x40xf32>
    %28 = arith.addf %26, %27 : vector<128x40xf32>
    %cst_14 = arith.constant 0.000000e+00 : f32
    %29 = vector.broadcast %cst_14 : f32 to vector<128x40xf32>
    %30 = arith.maximumf %28, %29 : vector<128x40xf32>
    %31 = vector.extract_strided_slice %30 {offsets = [0, 0], sizes = [112, 40], strides = [1, 1]} : vector<128x40xf32> to vector<112x40xf32>
    %32 = vector.extract_strided_slice %30 {offsets = [16, 0], sizes = [112, 40], strides = [1, 1]} : vector<128x40xf32> to vector<112x40xf32>
    %33 = arith.maximumf %31, %32 : vector<112x40xf32>
    %c80 = arith.constant 80 : index
    %c0_15 = arith.constant 0 : index
    %34 = vector.load %arg2[%c80, %c0_15] : memref<1024x320xbf16, #tpu.memory_space<vmem>>, vector<40x80xbf16>
    %c120 = arith.constant 120 : index
    %c0_16 = arith.constant 0 : index
    %35 = vector.load %arg2[%c120, %c0_16] : memref<1024x320xbf16, #tpu.memory_space<vmem>>, vector<40x80xbf16>
    %c2 = arith.constant 2 : index
    %c0_17 = arith.constant 0 : index
    %36 = vector.load %arg3[%c2, %c0_17] : memref<8x320xf32, #tpu.memory_space<vmem>>, vector<1x80xf32>
    %37 = arith.truncf %33 : vector<112x40xf32> to vector<112x40xbf16>
    %38 = vector.extract_strided_slice %37 {offsets = [0, 0], sizes = [96, 40], strides = [1, 1]} : vector<112x40xbf16> to vector<96x40xbf16>
    %39 = vector.extract_strided_slice %37 {offsets = [16, 0], sizes = [96, 40], strides = [1, 1]} : vector<112x40xbf16> to vector<96x40xbf16>
    %cst_18 = arith.constant dense<0.000000e+00> : vector<96x80xf32>
    %40 = tpu.matmul %38, %34, %cst_18 {dimension_numbers = #tpu.dot_dimension_numbers<[1], [0], [0], [1], [0, 0, 1, 1], [], []>} : vector<96x40xbf16>, vector<40x80xbf16>, vector<96x80xf32> -> vector<96x80xf32>
    %cst_19 = arith.constant dense<0.000000e+00> : vector<96x80xf32>
    %41 = tpu.matmul %39, %35, %cst_19 {dimension_numbers = #tpu.dot_dimension_numbers<[1], [0], [0], [1], [0, 0, 1, 1], [], []>} : vector<96x40xbf16>, vector<40x80xbf16>, vector<96x80xf32> -> vector<96x80xf32>
    %42 = arith.addf %40, %41 : vector<96x80xf32>
    %43 = vector.broadcast %36 : vector<1x80xf32> to vector<96x80xf32>
    %44 = arith.addf %42, %43 : vector<96x80xf32>
    %cst_20 = arith.constant 0.000000e+00 : f32
    %45 = vector.broadcast %cst_20 : f32 to vector<96x80xf32>
    %46 = arith.maximumf %44, %45 : vector<96x80xf32>
    %47 = vector.extract_strided_slice %46 {offsets = [0, 0], sizes = [80, 80], strides = [1, 1]} : vector<96x80xf32> to vector<80x80xf32>
    %48 = vector.extract_strided_slice %46 {offsets = [16, 0], sizes = [80, 80], strides = [1, 1]} : vector<96x80xf32> to vector<80x80xf32>
    %49 = arith.maximumf %47, %48 : vector<80x80xf32>
    %c160 = arith.constant 160 : index
    %c0_21 = arith.constant 0 : index
    %50 = vector.load %arg2[%c160, %c0_21] : memref<1024x320xbf16, #tpu.memory_space<vmem>>, vector<80x160xbf16>
    %c240 = arith.constant 240 : index
    %c0_22 = arith.constant 0 : index
    %51 = vector.load %arg2[%c240, %c0_22] : memref<1024x320xbf16, #tpu.memory_space<vmem>>, vector<80x160xbf16>
    %c3 = arith.constant 3 : index
    %c0_23 = arith.constant 0 : index
    %52 = vector.load %arg3[%c3, %c0_23] : memref<8x320xf32, #tpu.memory_space<vmem>>, vector<1x160xf32>
    %53 = arith.truncf %49 : vector<80x80xf32> to vector<80x80xbf16>
    %54 = vector.extract_strided_slice %53 {offsets = [0, 0], sizes = [64, 80], strides = [1, 1]} : vector<80x80xbf16> to vector<64x80xbf16>
    %55 = vector.extract_strided_slice %53 {offsets = [16, 0], sizes = [64, 80], strides = [1, 1]} : vector<80x80xbf16> to vector<64x80xbf16>
    %cst_24 = arith.constant dense<0.000000e+00> : vector<64x160xf32>
    %56 = tpu.matmul %54, %50, %cst_24 {dimension_numbers = #tpu.dot_dimension_numbers<[1], [0], [0], [1], [0, 0, 1, 1], [], []>} : vector<64x80xbf16>, vector<80x160xbf16>, vector<64x160xf32> -> vector<64x160xf32>
    %cst_25 = arith.constant dense<0.000000e+00> : vector<64x160xf32>
    %57 = tpu.matmul %55, %51, %cst_25 {dimension_numbers = #tpu.dot_dimension_numbers<[1], [0], [0], [1], [0, 0, 1, 1], [], []>} : vector<64x80xbf16>, vector<80x160xbf16>, vector<64x160xf32> -> vector<64x160xf32>
    %58 = arith.addf %56, %57 : vector<64x160xf32>
    %59 = vector.broadcast %52 : vector<1x160xf32> to vector<64x160xf32>
    %60 = arith.addf %58, %59 : vector<64x160xf32>
    %cst_26 = arith.constant 0.000000e+00 : f32
    %61 = vector.broadcast %cst_26 : f32 to vector<64x160xf32>
    %62 = arith.maximumf %60, %61 : vector<64x160xf32>
    %63 = vector.extract_strided_slice %62 {offsets = [0, 0], sizes = [48, 160], strides = [1, 1]} : vector<64x160xf32> to vector<48x160xf32>
    %64 = vector.extract_strided_slice %62 {offsets = [16, 0], sizes = [48, 160], strides = [1, 1]} : vector<64x160xf32> to vector<48x160xf32>
    %65 = arith.maximumf %63, %64 : vector<48x160xf32>
    %c320 = arith.constant 320 : index
    %c0_27 = arith.constant 0 : index
    %66 = vector.load %arg2[%c320, %c0_27] : memref<1024x320xbf16, #tpu.memory_space<vmem>>, vector<160x320xbf16>
    %c480 = arith.constant 480 : index
    %c0_28 = arith.constant 0 : index
    %67 = vector.load %arg2[%c480, %c0_28] : memref<1024x320xbf16, #tpu.memory_space<vmem>>, vector<160x320xbf16>
    %c4 = arith.constant 4 : index
    %c0_29 = arith.constant 0 : index
    %68 = vector.load %arg3[%c4, %c0_29] : memref<8x320xf32, #tpu.memory_space<vmem>>, vector<1x320xf32>
    %69 = arith.truncf %65 : vector<48x160xf32> to vector<48x160xbf16>
    %70 = vector.extract_strided_slice %69 {offsets = [0, 0], sizes = [32, 160], strides = [1, 1]} : vector<48x160xbf16> to vector<32x160xbf16>
    %71 = vector.extract_strided_slice %69 {offsets = [16, 0], sizes = [32, 160], strides = [1, 1]} : vector<48x160xbf16> to vector<32x160xbf16>
    %cst_30 = arith.constant dense<0.000000e+00> : vector<32x320xf32>
    %72 = tpu.matmul %70, %66, %cst_30 {dimension_numbers = #tpu.dot_dimension_numbers<[1], [0], [0], [1], [0, 0, 1, 1], [], []>} : vector<32x160xbf16>, vector<160x320xbf16>, vector<32x320xf32> -> vector<32x320xf32>
    %cst_31 = arith.constant dense<0.000000e+00> : vector<32x320xf32>
    %73 = tpu.matmul %71, %67, %cst_31 {dimension_numbers = #tpu.dot_dimension_numbers<[1], [0], [0], [1], [0, 0, 1, 1], [], []>} : vector<32x160xbf16>, vector<160x320xbf16>, vector<32x320xf32> -> vector<32x320xf32>
    %74 = arith.addf %72, %73 : vector<32x320xf32>
    %75 = vector.broadcast %68 : vector<1x320xf32> to vector<32x320xf32>
    %76 = arith.addf %74, %75 : vector<32x320xf32>
    %cst_32 = arith.constant 0.000000e+00 : f32
    %77 = vector.broadcast %cst_32 : f32 to vector<32x320xf32>
    %78 = arith.maximumf %76, %77 : vector<32x320xf32>
    %79 = vector.extract_strided_slice %78 {offsets = [0, 0], sizes = [16, 320], strides = [1, 1]} : vector<32x320xf32> to vector<16x320xf32>
    %80 = vector.extract_strided_slice %78 {offsets = [16, 0], sizes = [16, 320], strides = [1, 1]} : vector<32x320xf32> to vector<16x320xf32>
    %81 = arith.maximumf %79, %80 : vector<16x320xf32>
    %82 = arith.truncf %81 : vector<16x320xf32> to vector<16x320xbf16>
    %c640 = arith.constant 640 : index
    %c0_33 = arith.constant 0 : index
    %83 = vector.load %arg2[%c640, %c0_33] : memref<1024x320xbf16, #tpu.memory_space<vmem>>, vector<320x24xbf16>
    %cst_34 = arith.constant dense<0.000000e+00> : vector<16x24xf32>
    %84 = tpu.matmul %82, %83, %cst_34 {dimension_numbers = #tpu.dot_dimension_numbers<[1], [0], [0], [1], [0, 0, 1, 1], [], []>} : vector<16x320xbf16>, vector<320x24xbf16>, vector<16x24xf32> -> vector<16x24xf32>
    %c5 = arith.constant 5 : index
    %c0_35 = arith.constant 0 : index
    %85 = vector.load %arg3[%c5, %c0_35] : memref<8x320xf32, #tpu.memory_space<vmem>>, vector<1x24xf32>
    %86 = vector.broadcast %85 : vector<1x24xf32> to vector<16x24xf32>
    %87 = arith.addf %84, %86 : vector<16x24xf32>
    %cst_36 = arith.constant 0.000000e+00 : f32
    %88 = vector.broadcast %cst_36 : f32 to vector<16x24xf32>
    %89 = arith.maximumf %87, %88 : vector<16x24xf32>
    %90 = arith.truncf %89 : vector<16x24xf32> to vector<16x24xbf16>
    %c960 = arith.constant 960 : index
    %c0_37 = arith.constant 0 : index
    %91 = vector.load %arg2[%c960, %c0_37] : memref<1024x320xbf16, #tpu.memory_space<vmem>>, vector<24x40xbf16>
    %cst_38 = arith.constant dense<0.000000e+00> : vector<16x40xf32>
    %92 = tpu.matmul %90, %91, %cst_38 {dimension_numbers = #tpu.dot_dimension_numbers<[1], [0], [0], [1], [0, 0, 1, 1], [], []>} : vector<16x24xbf16>, vector<24x40xbf16>, vector<16x40xf32> -> vector<16x40xf32>
    %c6 = arith.constant 6 : index
    %c0_39 = arith.constant 0 : index
    %93 = vector.load %arg3[%c6, %c0_39] : memref<8x320xf32, #tpu.memory_space<vmem>>, vector<1x40xf32>
    %94 = vector.broadcast %93 : vector<1x40xf32> to vector<16x40xf32>
    %95 = arith.addf %92, %94 : vector<16x40xf32>
    %cst_40 = arith.constant 0.000000e+00 : f32
    %96 = vector.broadcast %cst_40 : f32 to vector<16x40xf32>
    %97 = arith.maximumf %95, %96 : vector<16x40xf32>
    %98 = arith.truncf %97 : vector<16x40xf32> to vector<16x40xbf16>
    %c984 = arith.constant 984 : index
    %c0_41 = arith.constant 0 : index
    %99 = vector.load %arg2[%c984, %c0_41] : memref<1024x320xbf16, #tpu.memory_space<vmem>>, vector<40x128xbf16>
    %cst_42 = arith.constant dense<0.000000e+00> : vector<16x128xf32>
    %100 = tpu.matmul %98, %99, %cst_42 {dimension_numbers = #tpu.dot_dimension_numbers<[1], [0], [0], [1], [0, 0, 1, 1], [], []>} : vector<16x40xbf16>, vector<40x128xbf16>, vector<16x128xf32> -> vector<16x128xf32>
    %c7 = arith.constant 7 : index
    %c0_43 = arith.constant 0 : index
    %101 = vector.load %arg3[%c7, %c0_43] : memref<8x320xf32, #tpu.memory_space<vmem>>, vector<1x128xf32>
    %102 = vector.broadcast %101 : vector<1x128xf32> to vector<16x128xf32>
    %103 = arith.addf %100, %102 : vector<16x128xf32>
    %c0_44 = arith.constant 0 : index
    %c0_45 = arith.constant 0 : index
    %104 = vector.load %arg4[%c0_44, %c0_45] : memref<16x128xf32, #tpu.memory_space<vmem>>, vector<16x128xf32>
    tpu.vector_store %arg4[%c0_44, %c0_45], %103 {strides = array<i32>} : memref<16x128xf32, #tpu.memory_space<vmem>>, vector<16x128xf32>,
    return
  }
  func.func @transform_0(%arg0: i32) -> (i32, i32, i32) {
    %c0_i32 = arith.constant 0 : i32
    %c0_i32_0 = arith.constant 0 : i32
    %c0_i32_1 = arith.constant 0 : i32
    return %arg0, %c0_i32, %c0_i32_0 : i32, i32, i32
  }
  func.func @transform_1(%arg0: i32) -> (i32, i32) {
    %c0_i32 = arith.constant 0 : i32
    %c0_i32_0 = arith.constant 0 : i32
    %c0_i32_1 = arith.constant 0 : i32
    return %c0_i32, %c0_i32_0 : i32, i32
  }
  func.func @transform_2(%arg0: i32) -> (i32, i32) {
    %c0_i32 = arith.constant 0 : i32
    %c0_i32_0 = arith.constant 0 : i32
    %c0_i32_1 = arith.constant 0 : i32
    return %c0_i32, %c0_i32_0 : i32, i32
  }
  func.func @transform_3(%arg0: i32) -> (i32, i32) {
    %c0_i32 = arith.constant 0 : i32
    %c0_i32_0 = arith.constant 0 : i32
    return %arg0, %c0_i32 : i32, i32
  }
}

</mosaic_0001>

<llo_original>
// kernel: tpu_custom_call.1
$region0: #{tpu_custom_call.1}
  #allocation0 [shape = 'u32[]', space=smem, size = 0x4, offset = 0x4, fixed_abs, tag = 'smem constant byte address 0x4 - core index']
  #allocation1 [shape = 'u32[144,128]{1,0:T(1,128)}', space=vmem, size = 0x12000, scoped, tag = 'internal scratch']
  %s0 = inlined_call_operand.vmem [shape: f32[1,176,16], index: 0, kind: input, shape index: {}]
  %s1 = inlined_call_operand.vmem [shape: bf16[1024,320], index: 1, kind: input, shape index: {}]
  %s2 = inlined_call_operand.vmem [shape: f32[8,320], index: 2, kind: input, shape index: {}]
  %s3 = inlined_call_operand.hbm [shape: f32[16,128], index: 3, kind: output, shape index: {}]
  %s4 = sld [smem:[#allocation0]]
  $region22: #{tpu_custom_call.1} parent=0
    _
  %s6 = ssub.s32 1, %s4
  %s7 = scalar_select 0, %s6, %s4
  $region1: #{tpu_custom_call.1} parent=0
    #allocation2 [shape = 'u8[8192]{0}', space=vmem, size = 0x2000, scoped, tag = 'output window, operand 0, single buffered']
    #allocation3 [shape = 's32[1]{0}', space=sflag, size = 0x4, scoped, tag = 'scoped memory for tpu_custom_call.1']
    %8 = vsyncpa [#allocation3], 0
    // Predicated region
    $region2: #{tpu_custom_call.1} parent=1 // pred_check
      _
    $region3: #{tpu_custom_call.1} parent=1 // pred_check_branch
      %10 = sbr.rel (0) target = $region5
    $region4: #{tpu_custom_call.1} parent=1 // pred_region
      _
    $region5: #{tpu_custom_call.1} parent=1 // pred_fallthru
      _
    // Predicated region
    $region6: #{tpu_custom_call.1} parent=1 // pred_check
      _
    $region7: #{tpu_custom_call.1} parent=1 // pred_check_branch
      %12 = sbr.rel (0) target = $region9
    $region8: #{tpu_custom_call.1} parent=1 // pred_region
      _
    $region9: #{tpu_custom_call.1} parent=1 // pred_fallthru
      _
    // Predicated region
    $region10: #{tpu_custom_call.1} parent=1 // pred_check
      _
    $region11: #{tpu_custom_call.1} parent=1 // pred_check_branch
      %14 = sbr.rel (0) target = $region13
    $region12: #{tpu_custom_call.1} parent=1 // pred_region
      _
    $region13: #{tpu_custom_call.1} parent=1 // pred_fallthru
      _
    %v16 = vld [vmem:[%s0] sm:$0xff]
    %v17 = vld [vmem:[%s0 + $0x8] sm:$0xff]
    %v18 = vld [vmem:[%s0 + $0x10] sm:$0xff]
    %v19 = vld [vmem:[%s0 + $0x18] sm:$0xff]
    %v20 = vld [vmem:[%s0 + $0x20] sm:$0xff]
    %v21 = vld [vmem:[%s0 + $0x28] sm:$0xff]
    %v22 = vld [vmem:[%s0 + $0x30] sm:$0xff]
    %v23 = vld [vmem:[%s0 + $0x38] sm:$0xff]
    %v24 = vld [vmem:[%s0 + $0x40] sm:$0xff]
    %v25 = vld [vmem:[%s0 + $0x48] sm:$0xff]
    %v26 = vld [vmem:[%s0 + $0x50] sm:$0xff]
    %v27 = vld [vmem:[%s0 + $0x58] sm:$0xff]
    %v28 = vld [vmem:[%s0 + $0x60] sm:$0xff]
    %v29 = vld [vmem:[%s0 + $0x68] sm:$0xff]
    %v30 = vld [vmem:[%s0 + $0x70] sm:$0xff]
    %v31 = vld [vmem:[%s0 + $0x78] sm:$0xff]
    %v32 = vld [vmem:[%s0 + $0x80] sm:$0xff]
    %v33 = vld [vmem:[%s0 + $0x88] sm:$0xff]
    %v34 = vld [vmem:[%s0 + $0x90] sm:$0xff]
    %v35 = vld [vmem:[%s0 + $0x98] sm:$0xff]
    %v36 = vld [vmem:[%s0 + $0xa0] sm:$0xff]
    %v37 = vld [vmem:[%s0 + $0xa8] sm:$0xff]
    %v38 = vld [vmem:[%s1] sm:$0xf]
    %v39 = vld [vmem:[%s1 + $0xc] sm:$0xf]
    %v40 = vld [vmem:[%s1 + $0x18] sm:$0xf]
    %v41 = vld [vmem:[%s1 + $0x24] sm:$0xf]
    %v42 = vld [vmem:[%s2] ss:$0 sm:$0xff]
    %v43 = vpack.c.bf16 %v17, %v16
    %v44 = vpack.c.bf16 %v19, %v18
    %v45 = vpack.c.bf16 %v21, %v20
    %v46 = vpack.c.bf16 %v23, %v22
    %v47 = vpack.c.bf16 %v25, %v24
    %v48 = vpack.c.bf16 %v27, %v26
    %v49 = vpack.c.bf16 %v29, %v28
    %v50 = vpack.c.bf16 %v31, %v30
    %v51 = vpack.c.bf16 %v33, %v32
    %v52 = vpack.c.bf16 %v35, %v34
    %v53 = vpack.c.bf16 %v37, %v36
    %v56 = vunpack.c.l.b16 %v40
    %v57 = vunpack.c.l.b16 %v41
    %v58 = vpack.c.b16 %v57, %v56
    %vm60 = vcmask 130048
    %v62 = vsel %vm60, %v44, 0
    %v65 = vsel %vm60, %v45, 0
    %v68 = vsel %vm60, %v46, 0
    %v71 = vsel %vm60, %v47, 0
    %v74 = vsel %vm60, %v48, 0
    %v77 = vsel %vm60, %v49, 0
    %v80 = vsel %vm60, %v50, 0
    %v83 = vsel %vm60, %v51, 0
    %v86 = vsel %vm60, %v52, 0
    %v89 = vsel %vm60, %v53, 0
    %91 = vmatprep.subr.bf16.mxu0 0
    %92 = vmatpush1.bf16.msra.mxu0 %v58
    %93 = vmatprep.subr.bf16.mxu0 0
    %94 = vmatpush1.bf16.msra.mxu0 0
    %95 = vmatprep.subr.bf16.mxu0 0
    %96 = vmatpush1.bf16.msra.mxu0 0
    %97 = vmatprep.subr.bf16.mxu0 0
    %98 = vmatpush1.bf16.msra.mxu0 0
    %99 = vmatprep.subr.bf16.mxu0 0
    %100 = vmatpush1.bf16.msra.mxu0 0
    %101 = vmatprep.subr.bf16.mxu0 0
    %102 = vmatpush1.bf16.msra.mxu0 0
    %103 = vmatprep.subr.bf16.mxu0 0
    %104 = vmatpush1.bf16.msra.mxu0 0
    %105 = vmatprep.subr.bf16.mxu0 0
    %106 = vmatpush1.bf16.msra.mxu0 0
    %107 = vmatprep.subr.bf16.mxu0 0
    %108 = vmatpush1.bf16.msra.mxu0 0
    %109 = vmatprep.subr.bf16.mxu0 0
    %110 = vmatpush1.bf16.msra.mxu0 0
    %111 = vmatprep.subr.bf16.mxu0 0
    %112 = vmatpush1.bf16.msra.mxu0 0
    %113 = vmatprep.subr.bf16.mxu0 0
    %114 = vmatpush1.bf16.msra.mxu0 0
    %115 = vmatprep.subr.bf16.mxu0 0
    %116 = vmatpush1.bf16.msra.mxu0 0
    %117 = vmatprep.subr.bf16.mxu0 0
    %118 = vmatpush1.bf16.msra.mxu0 0
    %119 = vmatprep.subr.bf16.mxu0 0
    %120 = vmatpush1.bf16.msra.mxu0 0
    %121 = vmatprep.subr.bf16.mxu0 0
    %122 = vmatpush1.bf16.msra.mxu0 0
    %123 = vmatprep.mubr.bf16.mxu0 0
    %124 = vmatmul.mubr.bf16.gmra.mrb[0].mxu0 %v62
    %v125 = vpop.f32.mrb[0].mxu0
    %v126 = vadd.f32 0.0, %v125
    %v127 = vpop.f32.mrb[0].mxu0
    %v128 = vpop.f32.mrb[0].mxu0
    %v129 = vadd.f32 0.0, %v128
    %v130 = vpop.f32.mrb[0].mxu0
    %131 = vmatprep.mubr.bf16.mxu0 0
    %132 = vmatmul.mubr.bf16.gmra.mrb[0].mxu0 %v65
    %v133 = vpop.f32.mrb[0].mxu0
    %v134 = vadd.f32 0.0, %v133
    %v135 = vpop.f32.mrb[0].mxu0
    %v136 = vpop.f32.mrb[0].mxu0
    %v137 = vadd.f32 0.0, %v136
    %v138 = vpop.f32.mrb[0].mxu0
    %139 = vmatprep.mubr.bf16.mxu0 0
    %140 = vmatmul.mubr.bf16.gmra.mrb[0].mxu0 %v68
    %v141 = vpop.f32.mrb[0].mxu0
    %v142 = vadd.f32 0.0, %v141
    %v143 = vpop.f32.mrb[0].mxu0
    %v144 = vpop.f32.mrb[0].mxu0
    %v145 = vadd.f32 0.0, %v144
    %v146 = vpop.f32.mrb[0].mxu0
    %147 = vmatprep.mubr.bf16.mxu0 0
    %148 = vmatmul.mubr.bf16.gmra.mrb[0].mxu0 %v71
    %v149 = vpop.f32.mrb[0].mxu0
    %v150 = vadd.f32 0.0, %v149
    %v151 = vpop.f32.mrb[0].mxu0
    %v152 = vpop.f32.mrb[0].mxu0
    %v153 = vadd.f32 0.0, %v152
    %v154 = vpop.f32.mrb[0].mxu0
    %155 = vmatprep.mubr.bf16.mxu0 0
    %156 = vmatmul.mubr.bf16.gmra.mrb[0].mxu0 %v74
    %v157 = vpop.f32.mrb[0].mxu0
    %v158 = vadd.f32 0.0, %v157
    %v159 = vpop.f32.mrb[0].mxu0
    %v160 = vpop.f32.mrb[0].mxu0
    %v161 = vadd.f32 0.0, %v160
    %v162 = vpop.f32.mrb[0].mxu0
    %163 = vmatprep.mubr.bf16.mxu0 0
    %164 = vmatmul.mubr.bf16.gmra.mrb[0].mxu0 %v77
    %v165 = vpop.f32.mrb[0].mxu0
    %v166 = vadd.f32 0.0, %v165
    %v167 = vpop.f32.mrb[0].mxu0
    %v168 = vpop.f32.mrb[0].mxu0
    %v169 = vadd.f32 0.0, %v168
    %v170 = vpop.f32.mrb[0].mxu0
    %171 = vmatprep.mubr.bf16.mxu0 0
    %172 = vmatmul.mubr.bf16.gmra.mrb[0].mxu0 %v80
    %v173 = vpop.f32.mrb[0].mxu0
    %v174 = vadd.f32 0.0, %v173
    %v175 = vpop.f32.mrb[0].mxu0
    %v176 = vpop.f32.mrb[0].mxu0
    %v177 = vadd.f32 0.0, %v176
    %v178 = vpop.f32.mrb[0].mxu0
    %179 = vmatprep.mubr.bf16.mxu0 0
    %180 = vmatmul.mubr.bf16.gmra.mrb[0].mxu0 %v83
    %v181 = vpop.f32.mrb[0].mxu0
    %v182 = vadd.f32 0.0, %v181
    %v183 = vpop.f32.mrb[0].mxu0
    %v184 = vpop.f32.mrb[0].mxu0
    %v185 = vadd.f32 0.0, %v184
    %v186 = vpop.f32.mrb[0].mxu0
    %187 = vmatprep.mubr.bf16.mxu0 0
    %188 = vmatmul.mubr.bf16.gmra.mrb[0].mxu0 %v86
    %v189 = vpop.f32.mrb[0].mxu0
    %v190 = vadd.f32 0.0, %v189
    %v191 = vpop.f32.mrb[0].mxu0
    %v192 = vpop.f32.mrb[0].mxu0
    %v193 = vadd.f32 0.0, %v192
    %v194 = vpop.f32.mrb[0].mxu0
    %195 = vmatprep.mubr.bf16.mxu0 0
    %196 = vmatmul.mubr.bf16.gmra.mrb[0].mxu0 %v89
    %v197 = vpop.f32.mrb[0].mxu0
    %v198 = vadd.f32 0.0, %v197
    %v199 = vpop.f32.mrb[0].mxu0
    %v200 = vpop.f32.mrb[0].mxu0
    %v201 = vadd.f32 0.0, %v200
    %v202 = vpop.f32.mrb[0].mxu0
    %203 = vdwg.mxu0
    %v206 = vunpack.c.l.b16 %v38
    %v207 = vunpack.c.l.b16 %v39
    %v208 = vpack.c.b16 %v207, %v206
    %v211 = vsel %vm60, %v43, 0
    %213 = vmatprep.subr.bf16.mxu0 0
    %214 = vmatpush1.bf16.msra.mxu0 %v208
    %215 = vmatprep.subr.bf16.mxu0 0
    %216 = vmatpush1.bf16.msra.mxu0 0
    %217 = vmatprep.subr.bf16.mxu0 0
    %218 = vmatpush1.bf16.msra.mxu0 0
    %219 = vmatprep.subr.bf16.mxu0 0
    %220 = vmatpush1.bf16.msra.mxu0 0
    %221 = vmatprep.subr.bf16.mxu0 0
    %222 = vmatpush1.bf16.msra.mxu0 0
    %223 = vmatprep.subr.bf16.mxu0 0
    %224 = vmatpush1.bf16.msra.mxu0 0
    %225 = vmatprep.subr.bf16.mxu0 0
    %226 = vmatpush1.bf16.msra.mxu0 0
    %227 = vmatprep.subr.bf16.mxu0 0
    %228 = vmatpush1.bf16.msra.mxu0 0
    %229 = vmatprep.subr.bf16.mxu0 0
    %230 = vmatpush1.bf16.msra.mxu0 0
    %231 = vmatprep.subr.bf16.mxu0 0
    %232 = vmatpush1.bf16.msra.mxu0 0
    %233 = vmatprep.subr.bf16.mxu0 0
    %234 = vmatpush1.bf16.msra.mxu0 0
    %235 = vmatprep.subr.bf16.mxu0 0
    %236 = vmatpush1.bf16.msra.mxu0 0
    %237 = vmatprep.subr.bf16.mxu0 0
    %238 = vmatpush1.bf16.msra.mxu0 0
    %239 = vmatprep.subr.bf16.mxu0 0
    %240 = vmatpush1.bf16.msra.mxu0 0
    %241 = vmatprep.subr.bf16.mxu0 0
    %242 = vmatpush1.bf16.msra.mxu0 0
    %243 = vmatprep.subr.bf16.mxu0 0
    %244 = vmatpush1.bf16.msra.mxu0 0
    %245 = vmatprep.mubr.bf16.mxu0 0
    %246 = vmatmul.mubr.bf16.gmra.mrb[0].mxu0 %v211
    %v247 = vpop.f32.mrb[0].mxu0
    %v248 = vadd.f32 %v126, %v247
    %v249 = vpop.f32.mrb[0].mxu0
    %v250 = vpop.f32.mrb[0].mxu0
    %v251 = vadd.f32 %v129, %v250
    %v252 = vpop.f32.mrb[0].mxu0
    %253 = vmatprep.mubr.bf16.mxu0 0
    %254 = vmatmul.mubr.bf16.gmra.mrb[0].mxu0 %v62
    %v255 = vpop.f32.mrb[0].mxu0
    %v256 = vadd.f32 %v134, %v255
    %v257 = vpop.f32.mrb[0].mxu0
    %v258 = vpop.f32.mrb[0].mxu0
    %v259 = vadd.f32 %v137, %v258
    %v260 = vpop.f32.mrb[0].mxu0
    %261 = vmatprep.mubr.bf16.mxu0 0
    %262 = vmatmul.mubr.bf16.gmra.mrb[0].mxu0 %v65
    %v263 = vpop.f32.mrb[0].mxu0
    %v264 = vadd.f32 %v142, %v263
    %v265 = vpop.f32.mrb[0].mxu0
    %v266 = vpop.f32.mrb[0].mxu0
    %v267 = vadd.f32 %v145, %v266
    %v268 = vpop.f32.mrb[0].mxu0
    %269 = vmatprep.mubr.bf16.mxu0 0
    %270 = vmatmul.mubr.bf16.gmra.mrb[0].mxu0 %v68
    %v271 = vpop.f32.mrb[0].mxu0
    %v272 = vadd.f32 %v150, %v271
    %v273 = vpop.f32.mrb[0].mxu0
    %v274 = vpop.f32.mrb[0].mxu0
    %v275 = vadd.f32 %v153, %v274
    %v276 = vpop.f32.mrb[0].mxu0
    %277 = vmatprep.mubr.bf16.mxu0 0
    %278 = vmatmul.mubr.bf16.gmra.mrb[0].mxu0 %v71
    %v279 = vpop.f32.mrb[0].mxu0
    %v280 = vadd.f32 %v158, %v279
    %v281 = vpop.f32.mrb[0].mxu0
    %v282 = vpop.f32.mrb[0].mxu0
    %v283 = vadd.f32 %v161, %v282
    %v284 = vpop.f32.mrb[0].mxu0
    %285 = vmatprep.mubr.bf16.mxu0 0
    %286 = vmatmul.mubr.bf16.gmra.mrb[0].mxu0 %v74
    %v287 = vpop.f32.mrb[0].mxu0
    %v288 = vadd.f32 %v166, %v287
    %v289 = vpop.f32.mrb[0].mxu0
    %v290 = vpop.f32.mrb[0].mxu0
    %v291 = vadd.f32 %v169, %v290
    %v292 = vpop.f32.mrb[0].mxu0
    %293 = vmatprep.mubr.bf16.mxu0 0
    %294 = vmatmul.mubr.bf16.gmra.mrb[0].mxu0 %v77
    %v295 = vpop.f32.mrb[0].mxu0
    %v296 = vadd.f32 %v174, %v295
    %v297 = vpop.f32.mrb[0].mxu0
    %v298 = vpop.f32.mrb[0].mxu0
    %v299 = vadd.f32 %v177, %v298
    %v300 = vpop.f32.mrb[0].mxu0
    %301 = vmatprep.mubr.bf16.mxu0 0
    %302 = vmatmul.mubr.bf16.gmra.mrb[0].mxu0 %v80
    %v303 = vpop.f32.mrb[0].mxu0
    %v304 = vadd.f32 %v182, %v303
    %v305 = vpop.f32.mrb[0].mxu0
    %v306 = vpop.f32.mrb[0].mxu0
    %v307 = vadd.f32 %v185, %v306
    %v308 = vpop.f32.mrb[0].mxu0
    %309 = vmatprep.mubr.bf16.mxu0 0
    %310 = vmatmul.mubr.bf16.gmra.mrb[0].mxu0 %v83
    %v311 = vpop.f32.mrb[0].mxu0
    %v312 = vadd.f32 %v190, %v311
    %v313 = vpop.f32.mrb[0].mxu0
    %v314 = vpop.f32.mrb[0].mxu0
    %v315 = vadd.f32 %v193, %v314
    %v316 = vpop.f32.mrb[0].mxu0
    %317 = vmatprep.mubr.bf16.mxu0 0
    %318 = vmatmul.mubr.bf16.gmra.mrb[0].mxu0 %v86
    %v319 = vpop.f32.mrb[0].mxu0
    %v320 = vadd.f32 %v198, %v319
    %v321 = vpop.f32.mrb[0].mxu0
    %v322 = vpop.f32.mrb[0].mxu0
    %v323 = vadd.f32 %v201, %v322
    %v324 = vpop.f32.mrb[0].mxu0
    %325 = vdwg.mxu0
    %v326 = vadd.f32 %v248, %v42
    %v327 = vadd.f32 %v251, %v42
    %v328 = vadd.f32 %v256, %v42
    %v329 = vadd.f32 %v259, %v42
    %v330 = vadd.f32 %v264, %v42
    %v331 = vadd.f32 %v267, %v42
    %v332 = vadd.f32 %v272, %v42
    %v333 = vadd.f32 %v275, %v42
    %v334 = vadd.f32 %v280, %v42
    %v335 = vadd.f32 %v283, %v42
    %v336 = vadd.f32 %v288, %v42
    %v337 = vadd.f32 %v291, %v42
    %v338 = vadd.f32 %v296, %v42
    %v339 = vadd.f32 %v299, %v42
    %v340 = vadd.f32 %v304, %v42
    %v341 = vadd.f32 %v307, %v42
    %v342 = vadd.f32 %v312, %v42
    %v343 = vadd.f32 %v315, %v42
    %v344 = vadd.f32 %v320, %v42
    %v345 = vadd.f32 %v323, %v42
    %v346 = vmax.f32 %v326, 0.0
    %v347 = vmax.f32 %v327, 0.0
    %v348 = vmax.f32 %v328, 0.0
    %v349 = vmax.f32 %v329, 0.0
    %v350 = vmax.f32 %v330, 0.0
    %v351 = vmax.f32 %v331, 0.0
    %v352 = vmax.f32 %v332, 0.0
    %v353 = vmax.f32 %v333, 0.0
    %v354 = vmax.f32 %v334, 0.0
    %v355 = vmax.f32 %v335, 0.0
    %v356 = vmax.f32 %v336, 0.0
    %v357 = vmax.f32 %v337, 0.0
    %v358 = vmax.f32 %v338, 0.0
    %v359 = vmax.f32 %v339, 0.0
    %v360 = vmax.f32 %v340, 0.0
    %v361 = vmax.f32 %v341, 0.0
    %v362 = vmax.f32 %v342, 0.0
    %v363 = vmax.f32 %v343, 0.0
    %v364 = vmax.f32 %v344, 0.0
    %v365 = vmax.f32 %v345, 0.0
    %v366 = vmax.f32 %v346, %v348
    %v367 = vmax.f32 %v347, %v349
    %v368 = vmax.f32 %v348, %v350
    %v369 = vmax.f32 %v349, %v351
    %v370 = vmax.f32 %v350, %v352
    %v371 = vmax.f32 %v351, %v353
    %v372 = vmax.f32 %v352, %v354
    %v373 = vmax.f32 %v353, %v355
    %v374 = vmax.f32 %v354, %v356
    %v375 = vmax.f32 %v355, %v357
    %v376 = vmax.f32 %v356, %v358
    %v377 = vmax.f32 %v357, %v359
    %v378 = vmax.f32 %v358, %v360
    %v379 = vmax.f32 %v359, %v361
    %v380 = vmax.f32 %v360, %v362
    %v381 = vmax.f32 %v361, %v363
    %v382 = vmax.f32 %v362, %v364
    %v383 = vmax.f32 %v363, %v365
    %v384 = vld [vmem:[%s1 + $0x30] sm:$0xf]
    %v385 = vld [vmem:[%s1 + $0x3c] sm:$0xf]
    %v386 = vld [vmem:[%s1 + $0x48] sm:$0xf]
    %v387 = vld [vmem:[%s1 + $0x54] sm:$0xf]
    %v388 = vld [vmem:[%s1 + $0x60] sm:$0xf]
    %v389 = vld [vmem:[%s1 + $0x6c] sm:$0xf]
    %v390 = vld [vmem:[%s2 + $0x1] ss:$0 sm:$0xff]
    %v391 = vpack.c.bf16 %v367, %v366
    %v392 = vpack.c.bf16 %v369, %v368
    %v393 = vpack.c.bf16 %v371, %v370
    %v394 = vpack.c.bf16 %v373, %v372
    %v395 = vpack.c.bf16 %v375, %v374
    %v396 = vpack.c.bf16 %v377, %v376
    %v397 = vpack.c.bf16 %v379, %v378
    %v398 = vpack.c.bf16 %v381, %v380
    %v399 = vpack.c.bf16 %v383, %v382
    %v403 = vunpack.c.l.b16 %v387
    %v404 = vunpack.c.l.b16 %v388
    %v405 = vunpack.c.l.b16 %v389
    %v406 = vpack.c.b16 %v404, %v403
    %v407 = vpack.c.b16 %v405, %v405
    %vm409 = vcmask 195584
    %v411 = vsel %vm409, %v392, 0
    %v414 = vsel %vm409, %v393, 0
    %v417 = vsel %vm409, %v394, 0
    %v420 = vsel %vm409, %v395, 0
    %v423 = vsel %vm409, %v396, 0
    %v426 = vsel %vm409, %v397, 0
    %v429 = vsel %vm409, %v398, 0
    %v432 = vsel %vm409, %v399, 0
    %vm434 = vcmask 1043456
    %v436 = vsel %vm434, %v407, 0
    %438 = vmatprep.subr.bf16.mxu0 0
    %439 = vmatpush1.bf16.msra.mxu0 %v406
    %440 = vmatprep.subr.bf16.mxu0 0
    %441 = vmatpush1.bf16.msra.mxu0 %v436
    %442 = vmatprep.subr.bf16.mxu0 0
    %443 = vmatpush1.bf16.msra.mxu0 0
    %444 = vmatprep.subr.bf16.mxu0 0
    %445 = vmatpush1.bf16.msra.mxu0 0
    %446 = vmatprep.subr.bf16.mxu0 0
    %447 = vmatpush1.bf16.msra.mxu0 0
    %448 = vmatprep.subr.bf16.mxu0 0
    %449 = vmatpush1.bf16.msra.mxu0 0
    %450 = vmatprep.subr.bf16.mxu0 0
    %451 = vmatpush1.bf16.msra.mxu0 0
    %452 = vmatprep.subr.bf16.mxu0 0
    %453 = vmatpush1.bf16.msra.mxu0 0
    %454 = vmatprep.subr.bf16.mxu0 0
    %455 = vmatpush1.bf16.msra.mxu0 0
    %456 = vmatprep.subr.bf16.mxu0 0
    %457 = vmatpush1.bf16.msra.mxu0 0
    %458 = vmatprep.subr.bf16.mxu0 0
    %459 = vmatpush1.bf16.msra.mxu0 0
    %460 = vmatprep.subr.bf16.mxu0 0
    %461 = vmatpush1.bf16.msra.mxu0 0
    %462 = vmatprep.subr.bf16.mxu0 0
    %463 = vmatpush1.bf16.msra.mxu0 0
    %464 = vmatprep.subr.bf16.mxu0 0
    %465 = vmatpush1.bf16.msra.mxu0 0
    %466 = vmatprep.subr.bf16.mxu0 0
    %467 = vmatpush1.bf16.msra.mxu0 0
    %468 = vmatprep.subr.bf16.mxu0 0
    %469 = vmatpush1.bf16.msra.mxu0 0
    %470 = vmatprep.mubr.bf16.mxu0 0
    %471 = vmatmul.mubr.bf16.gmra.mrb[0].mxu0 %v411
    %v472 = vpop.f32.mrb[0].mxu0
    %v473 = vadd.f32 0.0, %v472
    %v474 = vpop.f32.mrb[0].mxu0
    %v475 = vpop.f32.mrb[0].mxu0
    %v476 = vadd.f32 0.0, %v475
    %v477 = vpop.f32.mrb[0].mxu0
    %478 = vmatprep.mubr.bf16.mxu0 0
    %479 = vmatmul.mubr.bf16.gmra.mrb[0].mxu0 %v414
    %v480 = vpop.f32.mrb[0].mxu0
    %v481 = vadd.f32 0.0, %v480
    %v482 = vpop.f32.mrb[0].mxu0
    %v483 = vpop.f32.mrb[0].mxu0
    %v484 = vadd.f32 0.0, %v483
    %v485 = vpop.f32.mrb[0].mxu0
    %486 = vmatprep.mubr.bf16.mxu0 0
    %487 = vmatmul.mubr.bf16.gmra.mrb[0].mxu0 %v417
    %v488 = vpop.f32.mrb[0].mxu0
    %v489 = vadd.f32 0.0, %v488
    %v490 = vpop.f32.mrb[0].mxu0
    %v491 = vpop.f32.mrb[0].mxu0
    %v492 = vadd.f32 0.0, %v491
    %v493 = vpop.f32.mrb[0].mxu0
    %494 = vmatprep.mubr.bf16.mxu0 0
    %495 = vmatmul.mubr.bf16.gmra.mrb[0].mxu0 %v420
    %v496 = vpop.f32.mrb[0].mxu0
    %v497 = vadd.f32 0.0, %v496
    %v498 = vpop.f32.mrb[0].mxu0
    %v499 = vpop.f32.mrb[0].mxu0
    %v500 = vadd.f32 0.0, %v499
    %v501 = vpop.f32.mrb[0].mxu0
    %502 = vmatprep.mubr.bf16.mxu0 0
    %503 = vmatmul.mubr.bf16.gmra.mrb[0].mxu0 %v423
    %v504 = vpop.f32.mrb[0].mxu0
    %v505 = vadd.f32 0.0, %v504
    %v506 = vpop.f32.mrb[0].mxu0
    %v507 = vpop.f32.mrb[0].mxu0
    %v508 = vadd.f32 0.0, %v507
    %v509 = vpop.f32.mrb[0].mxu0
    %510 = vmatprep.mubr.bf16.mxu0 0
    %511 = vmatmul.mubr.bf16.gmra.mrb[0].mxu0 %v426
    %v512 = vpop.f32.mrb[0].mxu0
    %v513 = vadd.f32 0.0, %v512
    %v514 = vpop.f32.mrb[0].mxu0
    %v515 = vpop.f32.mrb[0].mxu0
    %v516 = vadd.f32 0.0, %v515
    %v517 = vpop.f32.mrb[0].mxu0
    %518 = vmatprep.mubr.bf16.mxu0 0
    %519 = vmatmul.mubr.bf16.gmra.mrb[0].mxu0 %v429
    %v520 = vpop.f32.mrb[0].mxu0
    %v521 = vadd.f32 0.0, %v520
    %v522 = vpop.f32.mrb[0].mxu0
    %v523 = vpop.f32.mrb[0].mxu0
    %v524 = vadd.f32 0.0, %v523
    %v525 = vpop.f32.mrb[0].mxu0
    %526 = vmatprep.mubr.bf16.mxu0 0
    %527 = vmatmul.mubr.bf16.gmra.mrb[0].mxu0 %v432
    %v528 = vpop.f32.mrb[0].mxu0
    %v529 = vadd.f32 0.0, %v528
    %v530 = vpop.f32.mrb[0].mxu0
    %v531 = vpop.f32.mrb[0].mxu0
    %v532 = vadd.f32 0.0, %v531
    %v533 = vpop.f32.mrb[0].mxu0
    %534 = vdwg.mxu0
    %v538 = vunpack.c.l.b16 %v384
    %v539 = vunpack.c.l.b16 %v385
    %v540 = vunpack.c.l.b16 %v386
    %v541 = vpack.c.b16 %v539, %v538
    %v542 = vpack.c.b16 %v540, %v540
    %v545 = vsel %vm409, %v391, 0
    %v548 = vsel %vm434, %v542, 0
    %550 = vmatprep.subr.bf16.mxu0 0
    %551 = vmatpush1.bf16.msra.mxu0 %v541
    %552 = vmatprep.subr.bf16.mxu0 0
    %553 = vmatpush1.bf16.msra.mxu0 %v548
    %554 = vmatprep.subr.bf16.mxu0 0
    %555 = vmatpush1.bf16.msra.mxu0 0
    %556 = vmatprep.subr.bf16.mxu0 0
    %557 = vmatpush1.bf16.msra.mxu0 0
    %558 = vmatprep.subr.bf16.mxu0 0
    %559 = vmatpush1.bf16.msra.mxu0 0
    %560 = vmatprep.subr.bf16.mxu0 0
    %561 = vmatpush1.bf16.msra.mxu0 0
    %562 = vmatprep.subr.bf16.mxu0 0
    %563 = vmatpush1.bf16.msra.mxu0 0
    %564 = vmatprep.subr.bf16.mxu0 0
    %565 = vmatpush1.bf16.msra.mxu0 0
    %566 = vmatprep.subr.bf16.mxu0 0
    %567 = vmatpush1.bf16.msra.mxu0 0
    %568 = vmatprep.subr.bf16.mxu0 0
    %569 = vmatpush1.bf16.msra.mxu0 0
    %570 = vmatprep.subr.bf16.mxu0 0
    %571 = vmatpush1.bf16.msra.mxu0 0
    %572 = vmatprep.subr.bf16.mxu0 0
    %573 = vmatpush1.bf16.msra.mxu0 0
    %574 = vmatprep.subr.bf16.mxu0 0
    %575 = vmatpush1.bf16.msra.mxu0 0
    %576 = vmatprep.subr.bf16.mxu0 0
    %577 = vmatpush1.bf16.msra.mxu0 0
    %578 = vmatprep.subr.bf16.mxu0 0
    %579 = vmatpush1.bf16.msra.mxu0 0
    %580 = vmatprep.subr.bf16.mxu0 0
    %581 = vmatpush1.bf16.msra.mxu0 0
    %582 = vmatprep.mubr.bf16.mxu0 0
    %583 = vmatmul.mubr.bf16.gmra.mrb[0].mxu0 %v545
    %v584 = vpop.f32.mrb[0].mxu0
    %v585 = vadd.f32 %v473, %v584
    %v586 = vpop.f32.mrb[0].mxu0
    %v587 = vpop.f32.mrb[0].mxu0
    %v588 = vadd.f32 %v476, %v587
    %v589 = vpop.f32.mrb[0].mxu0
    %590 = vmatprep.mubr.bf16.mxu0 0
    %591 = vmatmul.mubr.bf16.gmra.mrb[0].mxu0 %v411
    %v592 = vpop.f32.mrb[0].mxu0
    %v593 = vadd.f32 %v481, %v592
    %v594 = vpop.f32.mrb[0].mxu0
    %v595 = vpop.f32.mrb[0].mxu0
    %v596 = vadd.f32 %v484, %v595
    %v597 = vpop.f32.mrb[0].mxu0
    %598 = vmatprep.mubr.bf16.mxu0 0
    %599 = vmatmul.mubr.bf16.gmra.mrb[0].mxu0 %v414
    %v600 = vpop.f32.mrb[0].mxu0
    %v601 = vadd.f32 %v489, %v600
    %v602 = vpop.f32.mrb[0].mxu0
    %v603 = vpop.f32.mrb[0].mxu0
    %v604 = vadd.f32 %v492, %v603
    %v605 = vpop.f32.mrb[0].mxu0
    %606 = vmatprep.mubr.bf16.mxu0 0
    %607 = vmatmul.mubr.bf16.gmra.mrb[0].mxu0 %v417
    %v608 = vpop.f32.mrb[0].mxu0
    %v609 = vadd.f32 %v497, %v608
    %v610 = vpop.f32.mrb[0].mxu0
    %v611 = vpop.f32.mrb[0].mxu0
    %v612 = vadd.f32 %v500, %v611
    %v613 = vpop.f32.mrb[0].mxu0
    %614 = vmatprep.mubr.bf16.mxu0 0
    %615 = vmatmul.mubr.bf16.gmra.mrb[0].mxu0 %v420
    %v616 = vpop.f32.mrb[0].mxu0
    %v617 = vadd.f32 %v505, %v616
    %v618 = vpop.f32.mrb[0].mxu0
    %v619 = vpop.f32.mrb[0].mxu0
    %v620 = vadd.f32 %v508, %v619
    %v621 = vpop.f32.mrb[0].mxu0
    %622 = vmatprep.mubr.bf16.mxu0 0
    %623 = vmatmul.mubr.bf16.gmra.mrb[0].mxu0 %v423
    %v624 = vpop.f32.mrb[0].mxu0
    %v625 = vadd.f32 %v513, %v624
    %v626 = vpop.f32.mrb[0].mxu0
    %v627 = vpop.f32.mrb[0].mxu0
    %v628 = vadd.f32 %v516, %v627
    %v629 = vpop.f32.mrb[0].mxu0
    %630 = vmatprep.mubr.bf16.mxu0 0
    %631 = vmatmul.mubr.bf16.gmra.mrb[0].mxu0 %v426
    %v632 = vpop.f32.mrb[0].mxu0
    %v633 = vadd.f32 %v521, %v632
    %v634 = vpop.f32.mrb[0].mxu0
    %v635 = vpop.f32.mrb[0].mxu0
    %v636 = vadd.f32 %v524, %v635
    %v637 = vpop.f32.mrb[0].mxu0
    %638 = vmatprep.mubr.bf16.mxu0 0
    %639 = vmatmul.mubr.bf16.gmra.mrb[0].mxu0 %v429
    %v640 = vpop.f32.mrb[0].mxu0
    %v641 = vadd.f32 %v529, %v640
    %v642 = vpop.f32.mrb[0].mxu0
    %v643 = vpop.f32.mrb[0].mxu0
    %v644 = vadd.f32 %v532, %v643
    %v645 = vpop.f32.mrb[0].mxu0
    %646 = vdwg.mxu0
    %v647 = vadd.f32 %v585, %v390
    %v648 = vadd.f32 %v588, %v390
    %v649 = vadd.f32 %v593, %v390
    %v650 = vadd.f32 %v596, %v390
    %v651 = vadd.f32 %v601, %v390
    %v652 = vadd.f32 %v604, %v390
    %v653 = vadd.f32 %v609, %v390
    %v654 = vadd.f32 %v612, %v390
    %v655 = vadd.f32 %v617, %v390
    %v656 = vadd.f32 %v620, %v390
    %v657 = vadd.f32 %v625, %v390
    %v658 = vadd.f32 %v628, %v390
    %v659 = vadd.f32 %v633, %v390
    %v660 = vadd.f32 %v636, %v390
    %v661 = vadd.f32 %v641, %v390
    %v662 = vadd.f32 %v644, %v390
    %v663 = vmax.f32 %v647, 0.0
    %v664 = vmax.f32 %v648, 0.0
    %v665 = vmax.f32 %v649, 0.0
    %v666 = vmax.f32 %v650, 0.0
    %v667 = vmax.f32 %v651, 0.0
    %v668 = vmax.f32 %v652, 0.0
    %v669 = vmax.f32 %v653, 0.0
    %v670 = vmax.f32 %v654, 0.0
    %v671 = vmax.f32 %v655, 0.0
    %v672 = vmax.f32 %v656, 0.0
    %v673 = vmax.f32 %v657, 0.0
    %v674 = vmax.f32 %v658, 0.0
    %v675 = vmax.f32 %v659, 0.0
    %v676 = vmax.f32 %v660, 0.0
    %v677 = vmax.f32 %v661, 0.0
    %v678 = vmax.f32 %v662, 0.0
    %v679 = vmax.f32 %v663, %v665
    %v680 = vmax.f32 %v664, %v666
    %v681 = vmax.f32 %v665, %v667
    %v682 = vmax.f32 %v666, %v668
    %v683 = vmax.f32 %v667, %v669
    %v684 = vmax.f32 %v668, %v670
    %v685 = vmax.f32 %v669, %v671
    %v686 = vmax.f32 %v670, %v672
    %v687 = vmax.f32 %v671, %v673
    %v688 = vmax.f32 %v672, %v674
    %v689 = vmax.f32 %v673, %v675
    %v690 = vmax.f32 %v674, %v676
    %v691 = vmax.f32 %v675, %v677
    %v692 = vmax.f32 %v676, %v678
    %v693 = vld [vmem:[%s1 + $0x78] sm:$0xf]
    %v694 = vld [vmem:[%s1 + $0x84] sm:$0xf]
    %v695 = vld [vmem:[%s1 + $0x90] sm:$0xf]
    %v696 = vld [vmem:[%s1 + $0x9c] sm:$0xf]
    %v697 = vld [vmem:[%s1 + $0xa8] sm:$0xf]
    %v698 = vld [vmem:[%s1 + $0xb4] sm:$0xf]
    %v699 = vld [vmem:[%s1 + $0xc0] sm:$0xf]
    %v700 = vld [vmem:[%s1 + $0xcc] sm:$0xf]
    %v701 = vld [vmem:[%s1 + $0xd8] sm:$0xf]
    %v702 = vld [vmem:[%s1 + $0xe4] sm:$0xf]
    %v703 = vld [vmem:[%s2 + $0x2] ss:$0 sm:$0xff]
    %v704 = vpack.c.bf16 %v680, %v679
    %v705 = vpack.c.bf16 %v682, %v681
    %v706 = vpack.c.bf16 %v684, %v683
    %v707 = vpack.c.bf16 %v686, %v685
    %v708 = vpack.c.bf16 %v688, %v687
    %v709 = vpack.c.bf16 %v690, %v689
    %v710 = vpack.c.bf16 %v692, %v691
    %v716 = vunpack.c.l.b16 %v698
    %v717 = vunpack.c.l.b16 %v699
    %v718 = vunpack.c.l.b16 %v700
    %v719 = vunpack.c.l.b16 %v701
    %v720 = vunpack.c.l.b16 %v702
    %v721 = vpack.c.b16 %v717, %v716
    %v722 = vpack.c.b16 %v719, %v718
    %v723 = vpack.c.b16 %v720, %v720
    %vm726 = vcmask 326656
    %v728 = vsel %vm726, %v705, 0
    %v731 = vsel %vm726, %v706, 0
    %v734 = vsel %vm726, %v707, 0
    %v737 = vsel %vm726, %v708, 0
    %v740 = vsel %vm726, %v709, 0
    %v743 = vsel %vm726, %v710, 0
    %v746 = vsel %vm434, %v723, 0
    %748 = vmatprep.subr.bf16.mxu0 0
    %749 = vmatpush1.bf16.msra.mxu0 %v721
    %750 = vmatprep.subr.bf16.mxu0 0
    %751 = vmatpush1.bf16.msra.mxu0 %v722
    %752 = vmatprep.subr.bf16.mxu0 0
    %753 = vmatpush1.bf16.msra.mxu0 %v746
    %754 = vmatprep.subr.bf16.mxu0 0
    %755 = vmatpush1.bf16.msra.mxu0 0
    %756 = vmatprep.subr.bf16.mxu0 0
    %757 = vmatpush1.bf16.msra.mxu0 0
    %758 = vmatprep.subr.bf16.mxu0 0
    %759 = vmatpush1.bf16.msra.mxu0 0
    %760 = vmatprep.subr.bf16.mxu0 0
    %761 = vmatpush1.bf16.msra.mxu0 0
    %762 = vmatprep.subr.bf16.mxu0 0
    %763 = vmatpush1.bf16.msra.mxu0 0
    %764 = vmatprep.subr.bf16.mxu0 0
    %765 = vmatpush1.bf16.msra.mxu0 0
    %766 = vmatprep.subr.bf16.mxu0 0
    %767 = vmatpush1.bf16.msra.mxu0 0
    %768 = vmatprep.subr.bf16.mxu0 0
    %769 = vmatpush1.bf16.msra.mxu0 0
    %770 = vmatprep.subr.bf16.mxu0 0
    %771 = vmatpush1.bf16.msra.mxu0 0
    %772 = vmatprep.subr.bf16.mxu0 0
    %773 = vmatpush1.bf16.msra.mxu0 0
    %774 = vmatprep.subr.bf16.mxu0 0
    %775 = vmatpush1.bf16.msra.mxu0 0
    %776 = vmatprep.subr.bf16.mxu0 0
    %777 = vmatpush1.bf16.msra.mxu0 0
    %778 = vmatprep.subr.bf16.mxu0 0
    %779 = vmatpush1.bf16.msra.mxu0 0
    %780 = vmatprep.mubr.bf16.mxu0 0
    %781 = vmatmul.mubr.bf16.gmra.mrb[0].mxu0 %v728
    %v782 = vpop.f32.mrb[0].mxu0
    %v783 = vadd.f32 0.0, %v782
    %v784 = vpop.f32.mrb[0].mxu0
    %v785 = vpop.f32.mrb[0].mxu0
    %v786 = vadd.f32 0.0, %v785
    %v787 = vpop.f32.mrb[0].mxu0
    %788 = vmatprep.mubr.bf16.mxu0 0
    %789 = vmatmul.mubr.bf16.gmra.mrb[0].mxu0 %v731
    %v790 = vpop.f32.mrb[0].mxu0
    %v791 = vadd.f32 0.0, %v790
    %v792 = vpop.f32.mrb[0].mxu0
    %v793 = vpop.f32.mrb[0].mxu0
    %v794 = vadd.f32 0.0, %v793
    %v795 = vpop.f32.mrb[0].mxu0
    %796 = vmatprep.mubr.bf16.mxu0 0
    %797 = vmatmul.mubr.bf16.gmra.mrb[0].mxu0 %v734
    %v798 = vpop.f32.mrb[0].mxu0
    %v799 = vadd.f32 0.0, %v798
    %v800 = vpop.f32.mrb[0].mxu0
    %v801 = vpop.f32.mrb[0].mxu0
    %v802 = vadd.f32 0.0, %v801
    %v803 = vpop.f32.mrb[0].mxu0
    %804 = vmatprep.mubr.bf16.mxu0 0
    %805 = vmatmul.mubr.bf16.gmra.mrb[0].mxu0 %v737
    %v806 = vpop.f32.mrb[0].mxu0
    %v807 = vadd.f32 0.0, %v806
    %v808 = vpop.f32.mrb[0].mxu0
    %v809 = vpop.f32.mrb[0].mxu0
    %v810 = vadd.f32 0.0, %v809
    %v811 = vpop.f32.mrb[0].mxu0
    %812 = vmatprep.mubr.bf16.mxu0 0
    %813 = vmatmul.mubr.bf16.gmra.mrb[0].mxu0 %v740
    %v814 = vpop.f32.mrb[0].mxu0
    %v815 = vadd.f32 0.0, %v814
    %v816 = vpop.f32.mrb[0].mxu0
    %v817 = vpop.f32.mrb[0].mxu0
    %v818 = vadd.f32 0.0, %v817
    %v819 = vpop.f32.mrb[0].mxu0
    %820 = vmatprep.mubr.bf16.mxu0 0
    %821 = vmatmul.mubr.bf16.gmra.mrb[0].mxu0 %v743
    %v822 = vpop.f32.mrb[0].mxu0
    %v823 = vadd.f32 0.0, %v822
    %v824 = vpop.f32.mrb[0].mxu0
    %v825 = vpop.f32.mrb[0].mxu0
    %v826 = vadd.f32 0.0, %v825
    %v827 = vpop.f32.mrb[0].mxu0
    %828 = vdwg.mxu0
    %v834 = vunpack.c.l.b16 %v693
    %v835 = vunpack.c.l.b16 %v694
    %v836 = vunpack.c.l.b16 %v695
    %v837 = vunpack.c.l.b16 %v696
    %v838 = vunpack.c.l.b16 %v697
    %v839 = vpack.c.b16 %v835, %v834
    %v840 = vpack.c.b16 %v837, %v836
    %v841 = vpack.c.b16 %v838, %v838
    %v845 = vsel %vm726, %v704, 0
    %v848 = vsel %vm434, %v841, 0
    %850 = vmatprep.subr.bf16.mxu0 0
    %851 = vmatpush1.bf16.msra.mxu0 %v839
    %852 = vmatprep.subr.bf16.mxu0 0
    %853 = vmatpush1.bf16.msra.mxu0 %v840
    %854 = vmatprep.subr.bf16.mxu0 0
    %855 = vmatpush1.bf16.msra.mxu0 %v848
    %856 = vmatprep.subr.bf16.mxu0 0
    %857 = vmatpush1.bf16.msra.mxu0 0
    %858 = vmatprep.subr.bf16.mxu0 0
    %859 = vmatpush1.bf16.msra.mxu0 0
    %860 = vmatprep.subr.bf16.mxu0 0
    %861 = vmatpush1.bf16.msra.mxu0 0
    %862 = vmatprep.subr.bf16.mxu0 0
    %863 = vmatpush1.bf16.msra.mxu0 0
    %864 = vmatprep.subr.bf16.mxu0 0
    %865 = vmatpush1.bf16.msra.mxu0 0
    %866 = vmatprep.subr.bf16.mxu0 0
    %867 = vmatpush1.bf16.msra.mxu0 0
    %868 = vmatprep.subr.bf16.mxu0 0
    %869 = vmatpush1.bf16.msra.mxu0 0
    %870 = vmatprep.subr.bf16.mxu0 0
    %871 = vmatpush1.bf16.msra.mxu0 0
    %872 = vmatprep.subr.bf16.mxu0 0
    %873 = vmatpush1.bf16.msra.mxu0 0
    %874 = vmatprep.subr.bf16.mxu0 0
    %875 = vmatpush1.bf16.msra.mxu0 0
    %876 = vmatprep.subr.bf16.mxu0 0
    %877 = vmatpush1.bf16.msra.mxu0 0
    %878 = vmatprep.subr.bf16.mxu0 0
    %879 = vmatpush1.bf16.msra.mxu0 0
    %880 = vmatprep.subr.bf16.mxu0 0
    %881 = vmatpush1.bf16.msra.mxu0 0
    %882 = vmatprep.mubr.bf16.mxu0 0
    %883 = vmatmul.mubr.bf16.gmra.mrb[0].mxu0 %v845
    %v884 = vpop.f32.mrb[0].mxu0
    %v885 = vadd.f32 %v783, %v884
    %v886 = vpop.f32.mrb[0].mxu0
    %v887 = vpop.f32.mrb[0].mxu0
    %v888 = vadd.f32 %v786, %v887
    %v889 = vpop.f32.mrb[0].mxu0
    %890 = vmatprep.mubr.bf16.mxu0 0
    %891 = vmatmul.mubr.bf16.gmra.mrb[0].mxu0 %v728
    %v892 = vpop.f32.mrb[0].mxu0
    %v893 = vadd.f32 %v791, %v892
    %v894 = vpop.f32.mrb[0].mxu0
    %v895 = vpop.f32.mrb[0].mxu0
    %v896 = vadd.f32 %v794, %v895
    %v897 = vpop.f32.mrb[0].mxu0
    %898 = vmatprep.mubr.bf16.mxu0 0
    %899 = vmatmul.mubr.bf16.gmra.mrb[0].mxu0 %v731
    %v900 = vpop.f32.mrb[0].mxu0
    %v901 = vadd.f32 %v799, %v900
    %v902 = vpop.f32.mrb[0].mxu0
    %v903 = vpop.f32.mrb[0].mxu0
    %v904 = vadd.f32 %v802, %v903
    %v905 = vpop.f32.mrb[0].mxu0
    %906 = vmatprep.mubr.bf16.mxu0 0
    %907 = vmatmul.mubr.bf16.gmra.mrb[0].mxu0 %v734
    %v908 = vpop.f32.mrb[0].mxu0
    %v909 = vadd.f32 %v807, %v908
    %v910 = vpop.f32.mrb[0].mxu0
    %v911 = vpop.f32.mrb[0].mxu0
    %v912 = vadd.f32 %v810, %v911
    %v913 = vpop.f32.mrb[0].mxu0
    %914 = vmatprep.mubr.bf16.mxu0 0
    %915 = vmatmul.mubr.bf16.gmra.mrb[0].mxu0 %v737
    %v916 = vpop.f32.mrb[0].mxu0
    %v917 = vadd.f32 %v815, %v916
    %v918 = vpop.f32.mrb[0].mxu0
    %v919 = vpop.f32.mrb[0].mxu0
    %v920 = vadd.f32 %v818, %v919
    %v921 = vpop.f32.mrb[0].mxu0
    %922 = vmatprep.mubr.bf16.mxu0 0
    %923 = vmatmul.mubr.bf16.gmra.mrb[0].mxu0 %v740
    %v924 = vpop.f32.mrb[0].mxu0
    %v925 = vadd.f32 %v823, %v924
    %v926 = vpop.f32.mrb[0].mxu0
    %v927 = vpop.f32.mrb[0].mxu0
    %v928 = vadd.f32 %v826, %v927
    %v929 = vpop.f32.mrb[0].mxu0
    %930 = vdwg.mxu0
    %v931 = vadd.f32 %v885, %v703
    %v932 = vadd.f32 %v888, %v703
    %v933 = vadd.f32 %v893, %v703
    %v934 = vadd.f32 %v896, %v703
    %v935 = vadd.f32 %v901, %v703
    %v936 = vadd.f32 %v904, %v703
    %v937 = vadd.f32 %v909, %v703
    %v938 = vadd.f32 %v912, %v703
    %v939 = vadd.f32 %v917, %v703
    %v940 = vadd.f32 %v920, %v703
    %v941 = vadd.f32 %v925, %v703
    %v942 = vadd.f32 %v928, %v703
    %v943 = vmax.f32 %v931, 0.0
    %v944 = vmax.f32 %v932, 0.0
    %v945 = vmax.f32 %v933, 0.0
    %v946 = vmax.f32 %v934, 0.0
    %v947 = vmax.f32 %v935, 0.0
    %v948 = vmax.f32 %v936, 0.0
    %v949 = vmax.f32 %v937, 0.0
    %v950 = vmax.f32 %v938, 0.0
    %v951 = vmax.f32 %v939, 0.0
    %v952 = vmax.f32 %v940, 0.0
    %v953 = vmax.f32 %v941, 0.0
    %v954 = vmax.f32 %v942, 0.0
    %v955 = vmax.f32 %v943, %v945
    %v956 = vmax.f32 %v944, %v946
    %v957 = vmax.f32 %v945, %v947
    %v958 = vmax.f32 %v946, %v948
    %v959 = vmax.f32 %v947, %v949
    %v960 = vmax.f32 %v948, %v950
    %v961 = vmax.f32 %v949, %v951
    %v962 = vmax.f32 %v950, %v952
    %v963 = vmax.f32 %v951, %v953
    %v964 = vmax.f32 %v952, %v954
    %v965 = vld [vmem:[%s1 + $0xf0] sm:$0xff]
    %v966 = vld [vmem:[%s1 + $0xfc] sm:$0xff]
    %v967 = vld [vmem:[%s1 + $0x108] sm:$0xff]
    %v968 = vld [vmem:[%s1 + $0x114] sm:$0xff]
    %v969 = vld [vmem:[%s1 + $0x120] sm:$0xff]
    %v970 = vld [vmem:[%s1 + $0x12c] sm:$0xff]
    %v971 = vld [vmem:[%s1 + $0x138] sm:$0xff]
    %v972 = vld [vmem:[%s1 + $0x144] sm:$0xff]
    %v973 = vld [vmem:[%s1 + $0x150] sm:$0xff]
    %v974 = vld [vmem:[%s1 + $0x15c] sm:$0xff]
    %v975 = vld [vmem:[%s1 + $0x168] sm:$0xff]
    %v976 = vld [vmem:[%s1 + $0x174] sm:$0xff]
    %v977 = vld [vmem:[%s1 + $0x180] sm:$0xff]
    %v978 = vld [vmem:[%s1 + $0x18c] sm:$0xff]
    %v979 = vld [vmem:[%s1 + $0x198] sm:$0xff]
    %v980 = vld [vmem:[%s1 + $0x1a4] sm:$0xff]
    %v981 = vld [vmem:[%s1 + $0x1b0] sm:$0xff]
    %v982 = vld [vmem:[%s1 + $0x1bc] sm:$0xff]
    %v983 = vld [vmem:[%s1 + $0x1c8] sm:$0xff]
    %v984 = vld [vmem:[%s1 + $0x1d4] sm:$0xff]
    %s985 = scalar_lea.vmem %s2, 3
    %v986 = vld [vmem:[%s985] ss:$8 sm:$0x3]
    %v987 = vpack.c.bf16 %v956, %v955
    %v988 = vpack.c.bf16 %v958, %v957
    %v989 = vpack.c.bf16 %v960, %v959
    %v990 = vpack.c.bf16 %v962, %v961
    %v991 = vpack.c.bf16 %v964, %v963
    %v1002 = vunpack.c.l.b16 %v975
    %v1003 = vunpack.c.h.b16 %v975
    %v1004 = vunpack.c.l.b16 %v976
    %v1005 = vunpack.c.h.b16 %v976
    %v1006 = vunpack.c.l.b16 %v977
    %v1007 = vunpack.c.h.b16 %v977
    %v1008 = vunpack.c.l.b16 %v978
    %v1009 = vunpack.c.h.b16 %v978
    %v1010 = vunpack.c.l.b16 %v979
    %v1011 = vunpack.c.h.b16 %v979
    %v1012 = vunpack.c.l.b16 %v980
    %v1013 = vunpack.c.h.b16 %v980
    %v1014 = vunpack.c.l.b16 %v981
    %v1015 = vunpack.c.h.b16 %v981
    %v1016 = vunpack.c.l.b16 %v982
    %v1017 = vunpack.c.h.b16 %v982
    %v1018 = vunpack.c.l.b16 %v983
    %v1019 = vunpack.c.h.b16 %v983
    %v1020 = vunpack.c.l.b16 %v984
    %v1021 = vunpack.c.h.b16 %v984
    %v1022 = vpack.c.b16 %v1004, %v1002
    %v1023 = vpack.c.b16 %v1005, %v1003
    %v1024 = vpack.c.b16 %v1008, %v1006
    %v1025 = vpack.c.b16 %v1009, %v1007
    %v1026 = vpack.c.b16 %v1012, %v1010
    %v1027 = vpack.c.b16 %v1013, %v1011
    %v1028 = vpack.c.b16 %v1016, %v1014
    %v1029 = vpack.c.b16 %v1017, %v1015
    %v1030 = vpack.c.b16 %v1020, %v1018
    %v1031 = vpack.c.b16 %v1021, %v1019
    %vm1042 = vcmask 654336
    %v1044 = vsel %vm1042, %v988, 0
    %v1047 = vsel %vm1042, %v989, 0
    %v1050 = vsel %vm1042, %v990, 0
    %v1053 = vsel %vm1042, %v991, 0
    %1055 = vmatprep.subr.bf16.mxu0 %v1023
    %1056 = vmatpush1.bf16.msra.mxu0 %v1022
    %1057 = vmatprep.subr.bf16.mxu0 %v1025
    %1058 = vmatpush1.bf16.msra.mxu0 %v1024
    %1059 = vmatprep.subr.bf16.mxu0 %v1027
    %1060 = vmatpush1.bf16.msra.mxu0 %v1026
    %1061 = vmatprep.subr.bf16.mxu0 %v1029
    %1062 = vmatpush1.bf16.msra.mxu0 %v1028
    %1063 = vmatprep.subr.bf16.mxu0 %v1031
    %1064 = vmatpush1.bf16.msra.mxu0 %v1030
    %1065 = vmatprep.subr.bf16.mxu0 0
    %1066 = vmatpush1.bf16.msra.mxu0 0
    %1067 = vmatprep.subr.bf16.mxu0 0
    %1068 = vmatpush1.bf16.msra.mxu0 0
    %1069 = vmatprep.subr.bf16.mxu0 0
    %1070 = vmatpush1.bf16.msra.mxu0 0
    %1071 = vmatprep.subr.bf16.mxu0 0
    %1072 = vmatpush1.bf16.msra.mxu0 0
    %1073 = vmatprep.subr.bf16.mxu0 0
    %1074 = vmatpush1.bf16.msra.mxu0 0
    %1075 = vmatprep.subr.bf16.mxu0 0
    %1076 = vmatpush1.bf16.msra.mxu0 0
    %1077 = vmatprep.subr.bf16.mxu0 0
    %1078 = vmatpush1.bf16.msra.mxu0 0
    %1079 = vmatprep.subr.bf16.mxu0 0
    %1080 = vmatpush1.bf16.msra.mxu0 0
    %1081 = vmatprep.subr.bf16.mxu0 0
    %1082 = vmatpush1.bf16.msra.mxu0 0
    %1083 = vmatprep.subr.bf16.mxu0 0
    %1084 = vmatpush1.bf16.msra.mxu0 0
    %1085 = vmatprep.subr.bf16.mxu0 0
    %1086 = vmatpush1.bf16.msra.mxu0 0
    %1087 = vmatprep.mubr.bf16.mxu0 0
    %1088 = vmatmul.mubr.bf16.gmra.mrb[0].mxu0 %v1044
    %v1089 = vpop.f32.mrb[0].mxu0
    %v1090 = vadd.f32 0.0, %v1089
    %v1091 = vpop.f32.mrb[0].mxu0
    %v1092 = vadd.f32 0.0, %v1091
    %v1093 = vpop.f32.mrb[0].mxu0
    %v1094 = vadd.f32 0.0, %v1093
    %v1095 = vpop.f32.mrb[0].mxu0
    %v1096 = vadd.f32 0.0, %v1095
    %1097 = vmatprep.mubr.bf16.mxu0 0
    %1098 = vmatmul.mubr.bf16.gmra.mrb[0].mxu0 %v1047
    %v1099 = vpop.f32.mrb[0].mxu0
    %v1100 = vadd.f32 0.0, %v1099
    %v1101 = vpop.f32.mrb[0].mxu0
    %v1102 = vadd.f32 0.0, %v1101
    %v1103 = vpop.f32.mrb[0].mxu0
    %v1104 = vadd.f32 0.0, %v1103
    %v1105 = vpop.f32.mrb[0].mxu0
    %v1106 = vadd.f32 0.0, %v1105
    %1107 = vmatprep.mubr.bf16.mxu0 0
    %1108 = vmatmul.mubr.bf16.gmra.mrb[0].mxu0 %v1050
    %v1109 = vpop.f32.mrb[0].mxu0
    %v1110 = vadd.f32 0.0, %v1109
    %v1111 = vpop.f32.mrb[0].mxu0
    %v1112 = vadd.f32 0.0, %v1111
    %v1113 = vpop.f32.mrb[0].mxu0
    %v1114 = vadd.f32 0.0, %v1113
    %v1115 = vpop.f32.mrb[0].mxu0
    %v1116 = vadd.f32 0.0, %v1115
    %1117 = vmatprep.mubr.bf16.mxu0 0
    %1118 = vmatmul.mubr.bf16.gmra.mrb[0].mxu0 %v1053
    %v1119 = vpop.f32.mrb[0].mxu0
    %v1120 = vadd.f32 0.0, %v1119
    %v1121 = vpop.f32.mrb[0].mxu0
    %v1122 = vadd.f32 0.0, %v1121
    %v1123 = vpop.f32.mrb[0].mxu0
    %v1124 = vadd.f32 0.0, %v1123
    %v1125 = vpop.f32.mrb[0].mxu0
    %v1126 = vadd.f32 0.0, %v1125
    %1127 = vdwg.mxu0
    %v1138 = vunpack.c.l.b16 %v965
    %v1139 = vunpack.c.h.b16 %v965
    %v1140 = vunpack.c.l.b16 %v966
    %v1141 = vunpack.c.h.b16 %v966
    %v1142 = vunpack.c.l.b16 %v967
    %v1143 = vunpack.c.h.b16 %v967
    %v1144 = vunpack.c.l.b16 %v968
    %v1145 = vunpack.c.h.b16 %v968
    %v1146 = vunpack.c.l.b16 %v969
    %v1147 = vunpack.c.h.b16 %v969
    %v1148 = vunpack.c.l.b16 %v970
    %v1149 = vunpack.c.h.b16 %v970
    %v1150 = vunpack.c.l.b16 %v971
    %v1151 = vunpack.c.h.b16 %v971
    %v1152 = vunpack.c.l.b16 %v972
    %v1153 = vunpack.c.h.b16 %v972
    %v1154 = vunpack.c.l.b16 %v973
    %v1155 = vunpack.c.h.b16 %v973
    %v1156 = vunpack.c.l.b16 %v974
    %v1157 = vunpack.c.h.b16 %v974
    %v1158 = vpack.c.b16 %v1140, %v1138
    %v1159 = vpack.c.b16 %v1141, %v1139
    %v1160 = vpack.c.b16 %v1144, %v1142
    %v1161 = vpack.c.b16 %v1145, %v1143
    %v1162 = vpack.c.b16 %v1148, %v1146
    %v1163 = vpack.c.b16 %v1149, %v1147
    %v1164 = vpack.c.b16 %v1152, %v1150
    %v1165 = vpack.c.b16 %v1153, %v1151
    %v1166 = vpack.c.b16 %v1156, %v1154
    %v1167 = vpack.c.b16 %v1157, %v1155
    %v1179 = vsel %vm1042, %v987, 0
    %1181 = vmatprep.subr.bf16.mxu0 %v1159
    %1182 = vmatpush1.bf16.msra.mxu0 %v1158
    %1183 = vmatprep.subr.bf16.mxu0 %v1161
    %1184 = vmatpush1.bf16.msra.mxu0 %v1160
    %1185 = vmatprep.subr.bf16.mxu0 %v1163
    %1186 = vmatpush1.bf16.msra.mxu0 %v1162
    %1187 = vmatprep.subr.bf16.mxu0 %v1165
    %1188 = vmatpush1.bf16.msra.mxu0 %v1164
    %1189 = vmatprep.subr.bf16.mxu0 %v1167
    %1190 = vmatpush1.bf16.msra.mxu0 %v1166
    %1191 = vmatprep.subr.bf16.mxu0 0
    %1192 = vmatpush1.bf16.msra.mxu0 0
    %1193 = vmatprep.subr.bf16.mxu0 0
    %1194 = vmatpush1.bf16.msra.mxu0 0
    %1195 = vmatprep.subr.bf16.mxu0 0
    %1196 = vmatpush1.bf16.msra.mxu0 0
    %1197 = vmatprep.subr.bf16.mxu0 0
    %1198 = vmatpush1.bf16.msra.mxu0 0
    %1199 = vmatprep.subr.bf16.mxu0 0
    %1200 = vmatpush1.bf16.msra.mxu0 0
    %1201 = vmatprep.subr.bf16.mxu0 0
    %1202 = vmatpush1.bf16.msra.mxu0 0
    %1203 = vmatprep.subr.bf16.mxu0 0
    %1204 = vmatpush1.bf16.msra.mxu0 0
    %1205 = vmatprep.subr.bf16.mxu0 0
    %1206 = vmatpush1.bf16.msra.mxu0 0
    %1207 = vmatprep.subr.bf16.mxu0 0
    %1208 = vmatpush1.bf16.msra.mxu0 0
    %1209 = vmatprep.subr.bf16.mxu0 0
    %1210 = vmatpush1.bf16.msra.mxu0 0
    %1211 = vmatprep.subr.bf16.mxu0 0
    %1212 = vmatpush1.bf16.msra.mxu0 0
    %1213 = vmatprep.mubr.bf16.mxu0 0
    %1214 = vmatmul.mubr.bf16.gmra.mrb[0].mxu0 %v1179
    %v1215 = vpop.f32.mrb[0].mxu0
    %v1216 = vadd.f32 %v1090, %v1215
    %v1217 = vpop.f32.mrb[0].mxu0
    %v1218 = vadd.f32 %v1092, %v1217
    %v1219 = vpop.f32.mrb[0].mxu0
    %v1220 = vadd.f32 %v1094, %v1219
    %v1221 = vpop.f32.mrb[0].mxu0
    %v1222 = vadd.f32 %v1096, %v1221
    %1223 = vmatprep.mubr.bf16.mxu0 0
    %1224 = vmatmul.mubr.bf16.gmra.mrb[0].mxu0 %v1044
    %v1225 = vpop.f32.mrb[0].mxu0
    %v1226 = vadd.f32 %v1100, %v1225
    %v1227 = vpop.f32.mrb[0].mxu0
    %v1228 = vadd.f32 %v1102, %v1227
    %v1229 = vpop.f32.mrb[0].mxu0
    %v1230 = vadd.f32 %v1104, %v1229
    %v1231 = vpop.f32.mrb[0].mxu0
    %v1232 = vadd.f32 %v1106, %v1231
    %1233 = vmatprep.mubr.bf16.mxu0 0
    %1234 = vmatmul.mubr.bf16.gmra.mrb[0].mxu0 %v1047
    %v1235 = vpop.f32.mrb[0].mxu0
    %v1236 = vadd.f32 %v1110, %v1235
    %v1237 = vpop.f32.mrb[0].mxu0
    %v1238 = vadd.f32 %v1112, %v1237
    %v1239 = vpop.f32.mrb[0].mxu0
    %v1240 = vadd.f32 %v1114, %v1239
    %v1241 = vpop.f32.mrb[0].mxu0
    %v1242 = vadd.f32 %v1116, %v1241
    %1243 = vmatprep.mubr.bf16.mxu0 0
    %1244 = vmatmul.mubr.bf16.gmra.mrb[0].mxu0 %v1050
    %v1245 = vpop.f32.mrb[0].mxu0
    %v1246 = vadd.f32 %v1120, %v1245
    %v1247 = vpop.f32.mrb[0].mxu0
    %v1248 = vadd.f32 %v1122, %v1247
    %v1249 = vpop.f32.mrb[0].mxu0
    %v1250 = vadd.f32 %v1124, %v1249
    %v1251 = vpop.f32.mrb[0].mxu0
    %v1252 = vadd.f32 %v1126, %v1251
    %1253 = vdwg.mxu0
    %v1255 = vlaneseq
    %v1256 = vshrl.u32 %v1255, 7
    %v1257 = vsub.s32 0, %v1256
    %v1258 = vrot.slane %v986, %v1257
    %v1259 = vlaneseq
    %v1260 = vshrl.u32 %v1259, 7
    %v1261 = vsub.s32 1, %v1260
    %v1262 = vrot.slane %v986, %v1261
    %v1265 = vadd.f32 %v1216, %v1258
    %v1266 = vadd.f32 %v1218, %v1262
    %v1267 = vadd.f32 %v1220, %v1258
    %v1268 = vadd.f32 %v1222, %v1262
    %v1269 = vadd.f32 %v1226, %v1258
    %v1270 = vadd.f32 %v1228, %v1262
    %v1271 = vadd.f32 %v1230, %v1258
    %v1272 = vadd.f32 %v1232, %v1262
    %v1273 = vadd.f32 %v1236, %v1258
    %v1274 = vadd.f32 %v1238, %v1262
    %v1275 = vadd.f32 %v1240, %v1258
    %v1276 = vadd.f32 %v1242, %v1262
    %v1277 = vadd.f32 %v1246, %v1258
    %v1278 = vadd.f32 %v1248, %v1262
    %v1279 = vadd.f32 %v1250, %v1258
    %v1280 = vadd.f32 %v1252, %v1262
    %v1281 = vmax.f32 %v1265, 0.0
    %v1282 = vmax.f32 %v1266, 0.0
    %v1283 = vmax.f32 %v1267, 0.0
    %v1284 = vmax.f32 %v1268, 0.0
    %v1285 = vmax.f32 %v1269, 0.0
    %v1286 = vmax.f32 %v1270, 0.0
    %v1287 = vmax.f32 %v1271, 0.0
    %v1288 = vmax.f32 %v1272, 0.0
    %v1289 = vmax.f32 %v1273, 0.0
    %v1290 = vmax.f32 %v1274, 0.0
    %v1291 = vmax.f32 %v1275, 0.0
    %v1292 = vmax.f32 %v1276, 0.0
    %v1293 = vmax.f32 %v1277, 0.0
    %v1294 = vmax.f32 %v1278, 0.0
    %v1295 = vmax.f32 %v1279, 0.0
    %v1296 = vmax.f32 %v1280, 0.0
    %v1297 = vmax.f32 %v1281, %v1285
    %v1298 = vmax.f32 %v1282, %v1286
    %v1299 = vmax.f32 %v1283, %v1287
    %v1300 = vmax.f32 %v1284, %v1288
    %v1301 = vmax.f32 %v1285, %v1289
    %v1302 = vmax.f32 %v1286, %v1290
    %v1303 = vmax.f32 %v1287, %v1291
    %v1304 = vmax.f32 %v1288, %v1292
    %v1305 = vmax.f32 %v1289, %v1293
    %v1306 = vmax.f32 %v1290, %v1294
    %v1307 = vmax.f32 %v1291, %v1295
    %v1308 = vmax.f32 %v1292, %v1296
    %v1309 = vld [vmem:[%s1 + $0x1e0] sm:$0xff]
    %v1310 = vld [vmem:[%s1 + $0x1e8] sm:$0xf]
    %v1311 = vld [vmem:[%s1 + $0x1ec] sm:$0xff]
    %v1312 = vld [vmem:[%s1 + $0x1f4] sm:$0xf]
    %v1313 = vld [vmem:[%s1 + $0x1f8] sm:$0xff]
    %v1314 = vld [vmem:[%s1 + $0x200] sm:$0xf]
    %v1315 = vld [vmem:[%s1 + $0x204] sm:$0xff]
    %v1316 = vld [vmem:[%s1 + $0x20c] sm:$0xf]
    %v1317 = vld [vmem:[%s1 + $0x210] sm:$0xff]
    %v1318 = vld [vmem:[%s1 + $0x218] sm:$0xf]
    %v1319 = vld [vmem:[%s1 + $0x21c] sm:$0xff]
    %v1320 = vld [vmem:[%s1 + $0x224] sm:$0xf]
    %v1321 = vld [vmem:[%s1 + $0x228] sm:$0xff]
    %v1322 = vld [vmem:[%s1 + $0x230] sm:$0xf]
    %v1323 = vld [vmem:[%s1 + $0x234] sm:$0xff]
    %v1324 = vld [vmem:[%s1 + $0x23c] sm:$0xf]
    %v1325 = vld [vmem:[%s1 + $0x240] sm:$0xff]
    %v1326 = vld [vmem:[%s1 + $0x248] sm:$0xf]
    %v1327 = vld [vmem:[%s1 + $0x24c] sm:$0xff]
    %v1328 = vld [vmem:[%s1 + $0x254] sm:$0xf]
    %v1329 = vld [vmem:[%s1 + $0x258] sm:$0xff]
    %v1330 = vld [vmem:[%s1 + $0x260] sm:$0xf]
    %v1331 = vld [vmem:[%s1 + $0x264] sm:$0xff]
    %v1332 = vld [vmem:[%s1 + $0x26c] sm:$0xf]
    %v1333 = vld [vmem:[%s1 + $0x270] sm:$0xff]
    %v1334 = vld [vmem:[%s1 + $0x278] sm:$0xf]
    %v1335 = vld [vmem:[%s1 + $0x27c] sm:$0xff]
    %v1336 = vld [vmem:[%s1 + $0x284] sm:$0xf]
    %v1337 = vld [vmem:[%s1 + $0x288] sm:$0xff]
    %v1338 = vld [vmem:[%s1 + $0x290] sm:$0xf]
    %v1339 = vld [vmem:[%s1 + $0x294] sm:$0xff]
    %v1340 = vld [vmem:[%s1 + $0x29c] sm:$0xf]
    %v1341 = vld [vmem:[%s1 + $0x2a0] sm:$0xff]
    %v1342 = vld [vmem:[%s1 + $0x2a8] sm:$0xf]
    %v1343 = vld [vmem:[%s1 + $0x2ac] sm:$0xff]
    %v1344 = vld [vmem:[%s1 + $0x2b4] sm:$0xf]
    %v1345 = vld [vmem:[%s1 + $0x2b8] sm:$0xff]
    %v1346 = vld [vmem:[%s1 + $0x2c0] sm:$0xf]
    %v1347 = vld [vmem:[%s1 + $0x2c4] sm:$0xff]
    %v1348 = vld [vmem:[%s1 + $0x2cc] sm:$0xf]
    %v1349 = vld [vmem:[%s1 + $0x2d0] sm:$0xff]
    %v1350 = vld [vmem:[%s1 + $0x2d8] sm:$0xf]
    %v1351 = vld [vmem:[%s1 + $0x2dc] sm:$0xff]
    %v1352 = vld [vmem:[%s1 + $0x2e4] sm:$0xf]
    %v1353 = vld [vmem:[%s1 + $0x2e8] sm:$0xff]
    %v1354 = vld [vmem:[%s1 + $0x2f0] sm:$0xf]
    %v1355 = vld [vmem:[%s1 + $0x2f4] sm:$0xff]
    %v1356 = vld [vmem:[%s1 + $0x2fc] sm:$0xf]
    %v1357 = vld [vmem:[%s1 + $0x300] sm:$0xff]
    %v1358 = vld [vmem:[%s1 + $0x308] sm:$0xf]
    %v1359 = vld [vmem:[%s1 + $0x30c] sm:$0xff]
    %v1360 = vld [vmem:[%s1 + $0x314] sm:$0xf]
    %v1361 = vld [vmem:[%s1 + $0x318] sm:$0xff]
    %v1362 = vld [vmem:[%s1 + $0x320] sm:$0xf]
    %v1363 = vld [vmem:[%s1 + $0x324] sm:$0xff]
    %v1364 = vld [vmem:[%s1 + $0x32c] sm:$0xf]
    %v1365 = vld [vmem:[%s1 + $0x330] sm:$0xff]
    %v1366 = vld [vmem:[%s1 + $0x338] sm:$0xf]
    %v1367 = vld [vmem:[%s1 + $0x33c] sm:$0xff]
    %v1368 = vld [vmem:[%s1 + $0x344] sm:$0xf]
    %v1369 = vld [vmem:[%s1 + $0x348] sm:$0xff]
    %v1370 = vld [vmem:[%s1 + $0x350] sm:$0xf]
    %v1371 = vld [vmem:[%s1 + $0x354] sm:$0xff]
    %v1372 = vld [vmem:[%s1 + $0x35c] sm:$0xf]
    %v1373 = vld [vmem:[%s1 + $0x360] sm:$0xff]
    %v1374 = vld [vmem:[%s1 + $0x368] sm:$0xf]
    %v1375 = vld [vmem:[%s1 + $0x36c] sm:$0xff]
    %v1376 = vld [vmem:[%s1 + $0x374] sm:$0xf]
    %v1377 = vld [vmem:[%s1 + $0x378] sm:$0xff]
    %v1378 = vld [vmem:[%s1 + $0x380] sm:$0xf]
    %v1379 = vld [vmem:[%s1 + $0x384] sm:$0xff]
    %v1380 = vld [vmem:[%s1 + $0x38c] sm:$0xf]
    %v1381 = vld [vmem:[%s1 + $0x390] sm:$0xff]
    %v1382 = vld [vmem:[%s1 + $0x398] sm:$0xf]
    %v1383 = vld [vmem:[%s1 + $0x39c] sm:$0xff]
    %v1384 = vld [vmem:[%s1 + $0x3a4] sm:$0xf]
    %v1385 = vld [vmem:[%s1 + $0x3a8] sm:$0xff]
    %v1386 = vld [vmem:[%s1 + $0x3b0] sm:$0xf]
    %v1387 = vld [vmem:[%s1 + $0x3b4] sm:$0xff]
    %v1388 = vld [vmem:[%s1 + $0x3bc] sm:$0xf]
    %s1389 = scalar_lea.vmem %s2, 4
    %v1390 = vld [vmem:[%s1389] ss:$8 sm:$0x7]
    %v1391 = vpack.c.bf16 %v1299, %v1297
    %v1392 = vpack.c.bf16 %v1300, %v1298
    %v1393 = vpack.c.bf16 %v1303, %v1301
    %v1394 = vpack.c.bf16 %v1304, %v1302
    %v1395 = vpack.c.bf16 %v1307, %v1305
    %v1396 = vpack.c.bf16 %v1308, %v1306
    %v1437 = vunpack.c.l.b16 %v1349
    %v1438 = vunpack.c.h.b16 %v1349
    %v1439 = vunpack.c.l.b16 %v1350
    %v1440 = vunpack.c.l.b16 %v1351
    %v1441 = vunpack.c.h.b16 %v1351
    %v1442 = vunpack.c.l.b16 %v1352
    %v1443 = vunpack.c.l.b16 %v1353
    %v1444 = vunpack.c.h.b16 %v1353
    %v1445 = vunpack.c.l.b16 %v1354
    %v1446 = vunpack.c.l.b16 %v1355
    %v1447 = vunpack.c.h.b16 %v1355
    %v1448 = vunpack.c.l.b16 %v1356
    %v1449 = vunpack.c.l.b16 %v1357
    %v1450 = vunpack.c.h.b16 %v1357
    %v1451 = vunpack.c.l.b16 %v1358
    %v1452 = vunpack.c.l.b16 %v1359
    %v1453 = vunpack.c.h.b16 %v1359
    %v1454 = vunpack.c.l.b16 %v1360
    %v1455 = vunpack.c.l.b16 %v1361
    %v1456 = vunpack.c.h.b16 %v1361
    %v1457 = vunpack.c.l.b16 %v1362
    %v1458 = vunpack.c.l.b16 %v1363
    %v1459 = vunpack.c.h.b16 %v1363
    %v1460 = vunpack.c.l.b16 %v1364
    %v1461 = vunpack.c.l.b16 %v1365
    %v1462 = vunpack.c.h.b16 %v1365
    %v1463 = vunpack.c.l.b16 %v1366
    %v1464 = vunpack.c.l.b16 %v1367
    %v1465 = vunpack.c.h.b16 %v1367
    %v1466 = vunpack.c.l.b16 %v1368
    %v1467 = vunpack.c.l.b16 %v1369
    %v1468 = vunpack.c.h.b16 %v1369
    %v1469 = vunpack.c.l.b16 %v1370
    %v1470 = vunpack.c.l.b16 %v1371
    %v1471 = vunpack.c.h.b16 %v1371
    %v1472 = vunpack.c.l.b16 %v1372
    %v1473 = vunpack.c.l.b16 %v1373
    %v1474 = vunpack.c.h.b16 %v1373
    %v1475 = vunpack.c.l.b16 %v1374
    %v1476 = vunpack.c.l.b16 %v1375
    %v1477 = vunpack.c.h.b16 %v1375
    %v1478 = vunpack.c.l.b16 %v1376
    %v1479 = vunpack.c.l.b16 %v1377
    %v1480 = vunpack.c.h.b16 %v1377
    %v1481 = vunpack.c.l.b16 %v1378
    %v1482 = vunpack.c.l.b16 %v1379
    %v1483 = vunpack.c.h.b16 %v1379
    %v1484 = vunpack.c.l.b16 %v1380
    %v1485 = vunpack.c.l.b16 %v1381
    %v1486 = vunpack.c.h.b16 %v1381
    %v1487 = vunpack.c.l.b16 %v1382
    %v1488 = vunpack.c.l.b16 %v1383
    %v1489 = vunpack.c.h.b16 %v1383
    %v1490 = vunpack.c.l.b16 %v1384
    %v1491 = vunpack.c.l.b16 %v1385
    %v1492 = vunpack.c.h.b16 %v1385
    %v1493 = vunpack.c.l.b16 %v1386
    %v1494 = vunpack.c.l.b16 %v1387
    %v1495 = vunpack.c.h.b16 %v1387
    %v1496 = vunpack.c.l.b16 %v1388
    %v1497 = vpack.c.b16 %v1440, %v1437
    %v1498 = vpack.c.b16 %v1441, %v1438
    %v1499 = vpack.c.b16 %v1442, %v1439
    %v1500 = vpack.c.b16 %v1446, %v1443
    %v1501 = vpack.c.b16 %v1447, %v1444
    %v1502 = vpack.c.b16 %v1448, %v1445
    %v1503 = vpack.c.b16 %v1452, %v1449
    %v1504 = vpack.c.b16 %v1453, %v1450
    %v1505 = vpack.c.b16 %v1454, %v1451
    %v1506 = vpack.c.b16 %v1458, %v1455
    %v1507 = vpack.c.b16 %v1459, %v1456
    %v1508 = vpack.c.b16 %v1460, %v1457
    %v1509 = vpack.c.b16 %v1464, %v1461
    %v1510 = vpack.c.b16 %v1465, %v1462
    %v1511 = vpack.c.b16 %v1466, %v1463
    %v1512 = vpack.c.b16 %v1470, %v1467
    %v1513 = vpack.c.b16 %v1471, %v1468
    %v1514 = vpack.c.b16 %v1472, %v1469
    %v1515 = vpack.c.b16 %v1476, %v1473
    %v1516 = vpack.c.b16 %v1477, %v1474
    %v1517 = vpack.c.b16 %v1478, %v1475
    %v1518 = vpack.c.b16 %v1482, %v1479
    %v1519 = vpack.c.b16 %v1483, %v1480
    %v1520 = vpack.c.b16 %v1484, %v1481
    %v1521 = vpack.c.b16 %v1488, %v1485
    %v1522 = vpack.c.b16 %v1489, %v1486
    %v1523 = vpack.c.b16 %v1490, %v1487
    %v1524 = vpack.c.b16 %v1494, %v1491
    %v1525 = vpack.c.b16 %v1495, %v1492
    %v1526 = vpack.c.b16 %v1496, %v1493
    %vm1557 = vcmask 261120
    %v1559 = vsel %vm1557, %v1394, 0
    %v1562 = vsel %vm1557, %v1396, 0
    %1564 = vmatprep.subr.bf16.mxu0 %v1498
    %1565 = vmatpush1.bf16.msra.mxu0 %v1497
    %1566 = vmatprep.subr.bf16.mxu0 %v1501
    %1567 = vmatpush1.bf16.msra.mxu0 %v1500
    %1568 = vmatprep.subr.bf16.mxu0 %v1504
    %1569 = vmatpush1.bf16.msra.mxu0 %v1503
    %1570 = vmatprep.subr.bf16.mxu0 %v1507
    %1571 = vmatpush1.bf16.msra.mxu0 %v1506
    %1572 = vmatprep.subr.bf16.mxu0 %v1510
    %1573 = vmatpush1.bf16.msra.mxu0 %v1509
    %1574 = vmatprep.subr.bf16.mxu0 %v1513
    %1575 = vmatpush1.bf16.msra.mxu0 %v1512
    %1576 = vmatprep.subr.bf16.mxu0 %v1516
    %1577 = vmatpush1.bf16.msra.mxu0 %v1515
    %1578 = vmatprep.subr.bf16.mxu0 %v1519
    %1579 = vmatpush1.bf16.msra.mxu0 %v1518
    %1580 = vmatprep.subr.bf16.mxu0 %v1522
    %1581 = vmatpush1.bf16.msra.mxu0 %v1521
    %1582 = vmatprep.subr.bf16.mxu0 %v1525
    %1583 = vmatpush1.bf16.msra.mxu0 %v1524
    %1584 = vmatprep.subr.bf16.mxu0 0
    %1585 = vmatpush1.bf16.msra.mxu0 0
    %1586 = vmatprep.subr.bf16.mxu0 0
    %1587 = vmatpush1.bf16.msra.mxu0 0
    %1588 = vmatprep.subr.bf16.mxu0 0
    %1589 = vmatpush1.bf16.msra.mxu0 0
    %1590 = vmatprep.subr.bf16.mxu0 0
    %1591 = vmatpush1.bf16.msra.mxu0 0
    %1592 = vmatprep.subr.bf16.mxu0 0
    %1593 = vmatpush1.bf16.msra.mxu0 0
    %1594 = vmatprep.subr.bf16.mxu0 0
    %1595 = vmatpush1.bf16.msra.mxu0 0
    %1596 = vmatprep.mubr.bf16.mxu0 %v1559
    %1597 = vmatmul.mubr.bf16.gmra.mrb[0].mxu0 %v1393
    %v1598 = vpop.f32.mrb[0].mxu0
    %v1599 = vadd.f32 0.0, %v1598
    %v1600 = vpop.f32.mrb[0].mxu0
    %v1601 = vadd.f32 0.0, %v1600
    %v1602 = vpop.f32.mrb[0].mxu0
    %v1603 = vadd.f32 0.0, %v1602
    %v1604 = vpop.f32.mrb[0].mxu0
    %v1605 = vadd.f32 0.0, %v1604
    %1606 = vmatprep.mubr.bf16.mxu0 %v1562
    %1607 = vmatmul.mubr.bf16.gmra.mrb[0].mxu0 %v1395
    %v1608 = vpop.f32.mrb[0].mxu0
    %v1609 = vadd.f32 0.0, %v1608
    %v1610 = vpop.f32.mrb[0].mxu0
    %v1611 = vadd.f32 0.0, %v1610
    %v1612 = vpop.f32.mrb[0].mxu0
    %v1613 = vadd.f32 0.0, %v1612
    %v1614 = vpop.f32.mrb[0].mxu0
    %v1615 = vadd.f32 0.0, %v1614
    %1616 = vdwg.mxu0
    %1617 = vmatprep.subr.bf16.mxu0 0
    %1618 = vmatpush1.bf16.msra.mxu0 %v1499
    %1619 = vmatprep.subr.bf16.mxu0 0
    %1620 = vmatpush1.bf16.msra.mxu0 %v1502
    %1621 = vmatprep.subr.bf16.mxu0 0
    %1622 = vmatpush1.bf16.msra.mxu0 %v1505
    %1623 = vmatprep.subr.bf16.mxu0 0
    %1624 = vmatpush1.bf16.msra.mxu0 %v1508
    %1625 = vmatprep.subr.bf16.mxu0 0
    %1626 = vmatpush1.bf16.msra.mxu0 %v1511
    %1627 = vmatprep.subr.bf16.mxu0 0
    %1628 = vmatpush1.bf16.msra.mxu0 %v1514
    %1629 = vmatprep.subr.bf16.mxu0 0
    %1630 = vmatpush1.bf16.msra.mxu0 %v1517
    %1631 = vmatprep.subr.bf16.mxu0 0
    %1632 = vmatpush1.bf16.msra.mxu0 %v1520
    %1633 = vmatprep.subr.bf16.mxu0 0
    %1634 = vmatpush1.bf16.msra.mxu0 %v1523
    %1635 = vmatprep.subr.bf16.mxu0 0
    %1636 = vmatpush1.bf16.msra.mxu0 %v1526
    %1637 = vmatprep.subr.bf16.mxu0 0
    %1638 = vmatpush1.bf16.msra.mxu0 0
    %1639 = vmatprep.subr.bf16.mxu0 0
    %1640 = vmatpush1.bf16.msra.mxu0 0
    %1641 = vmatprep.subr.bf16.mxu0 0
    %1642 = vmatpush1.bf16.msra.mxu0 0
    %1643 = vmatprep.subr.bf16.mxu0 0
    %1644 = vmatpush1.bf16.msra.mxu0 0
    %1645 = vmatprep.subr.bf16.mxu0 0
    %1646 = vmatpush1.bf16.msra.mxu0 0
    %1647 = vmatprep.subr.bf16.mxu0 0
    %1648 = vmatpush1.bf16.msra.mxu0 0
    %1649 = vmatprep.mubr.bf16.mxu0 %v1559
    %1650 = vmatmul.mubr.bf16.gmra.mrb[0].mxu0 %v1393
    %v1651 = vpop.f32.mrb[0].mxu0
    %v1652 = vadd.f32 0.0, %v1651
    %v1653 = vpop.f32.mrb[0].mxu0
    %v1654 = vpop.f32.mrb[0].mxu0
    %v1655 = vadd.f32 0.0, %v1654
    %v1656 = vpop.f32.mrb[0].mxu0
    %1657 = vmatprep.mubr.bf16.mxu0 %v1562
    %1658 = vmatmul.mubr.bf16.gmra.mrb[0].mxu0 %v1395
    %v1659 = vpop.f32.mrb[0].mxu0
    %v1660 = vadd.f32 0.0, %v1659
    %v1661 = vpop.f32.mrb[0].mxu0
    %v1662 = vpop.f32.mrb[0].mxu0
    %v1663 = vadd.f32 0.0, %v1662
    %v1664 = vpop.f32.mrb[0].mxu0
    %1665 = vdwg.mxu0
    %v1706 = vunpack.c.l.b16 %v1309
    %v1707 = vunpack.c.h.b16 %v1309
    %v1708 = vunpack.c.l.b16 %v1310
    %v1709 = vunpack.c.l.b16 %v1311
    %v1710 = vunpack.c.h.b16 %v1311
    %v1711 = vunpack.c.l.b16 %v1312
    %v1712 = vunpack.c.l.b16 %v1313
    %v1713 = vunpack.c.h.b16 %v1313
    %v1714 = vunpack.c.l.b16 %v1314
    %v1715 = vunpack.c.l.b16 %v1315
    %v1716 = vunpack.c.h.b16 %v1315
    %v1717 = vunpack.c.l.b16 %v1316
    %v1718 = vunpack.c.l.b16 %v1317
    %v1719 = vunpack.c.h.b16 %v1317
    %v1720 = vunpack.c.l.b16 %v1318
    %v1721 = vunpack.c.l.b16 %v1319
    %v1722 = vunpack.c.h.b16 %v1319
    %v1723 = vunpack.c.l.b16 %v1320
    %v1724 = vunpack.c.l.b16 %v1321
    %v1725 = vunpack.c.h.b16 %v1321
    %v1726 = vunpack.c.l.b16 %v1322
    %v1727 = vunpack.c.l.b16 %v1323
    %v1728 = vunpack.c.h.b16 %v1323
    %v1729 = vunpack.c.l.b16 %v1324
    %v1730 = vunpack.c.l.b16 %v1325
    %v1731 = vunpack.c.h.b16 %v1325
    %v1732 = vunpack.c.l.b16 %v1326
    %v1733 = vunpack.c.l.b16 %v1327
    %v1734 = vunpack.c.h.b16 %v1327
    %v1735 = vunpack.c.l.b16 %v1328
    %v1736 = vunpack.c.l.b16 %v1329
    %v1737 = vunpack.c.h.b16 %v1329
    %v1738 = vunpack.c.l.b16 %v1330
    %v1739 = vunpack.c.l.b16 %v1331
    %v1740 = vunpack.c.h.b16 %v1331
    %v1741 = vunpack.c.l.b16 %v1332
    %v1742 = vunpack.c.l.b16 %v1333
    %v1743 = vunpack.c.h.b16 %v1333
    %v1744 = vunpack.c.l.b16 %v1334
    %v1745 = vunpack.c.l.b16 %v1335
    %v1746 = vunpack.c.h.b16 %v1335
    %v1747 = vunpack.c.l.b16 %v1336
    %v1748 = vunpack.c.l.b16 %v1337
    %v1749 = vunpack.c.h.b16 %v1337
    %v1750 = vunpack.c.l.b16 %v1338
    %v1751 = vunpack.c.l.b16 %v1339
    %v1752 = vunpack.c.h.b16 %v1339
    %v1753 = vunpack.c.l.b16 %v1340
    %v1754 = vunpack.c.l.b16 %v1341
    %v1755 = vunpack.c.h.b16 %v1341
    %v1756 = vunpack.c.l.b16 %v1342
    %v1757 = vunpack.c.l.b16 %v1343
    %v1758 = vunpack.c.h.b16 %v1343
    %v1759 = vunpack.c.l.b16 %v1344
    %v1760 = vunpack.c.l.b16 %v1345
    %v1761 = vunpack.c.h.b16 %v1345
    %v1762 = vunpack.c.l.b16 %v1346
    %v1763 = vunpack.c.l.b16 %v1347
    %v1764 = vunpack.c.h.b16 %v1347
    %v1765 = vunpack.c.l.b16 %v1348
    %v1766 = vpack.c.b16 %v1709, %v1706
    %v1767 = vpack.c.b16 %v1710, %v1707
    %v1768 = vpack.c.b16 %v1711, %v1708
    %v1769 = vpack.c.b16 %v1715, %v1712
    %v1770 = vpack.c.b16 %v1716, %v1713
    %v1771 = vpack.c.b16 %v1717, %v1714
    %v1772 = vpack.c.b16 %v1721, %v1718
    %v1773 = vpack.c.b16 %v1722, %v1719
    %v1774 = vpack.c.b16 %v1723, %v1720
    %v1775 = vpack.c.b16 %v1727, %v1724
    %v1776 = vpack.c.b16 %v1728, %v1725
    %v1777 = vpack.c.b16 %v1729, %v1726
    %v1778 = vpack.c.b16 %v1733, %v1730
    %v1779 = vpack.c.b16 %v1734, %v1731
    %v1780 = vpack.c.b16 %v1735, %v1732
    %v1781 = vpack.c.b16 %v1739, %v1736
    %v1782 = vpack.c.b16 %v1740, %v1737
    %v1783 = vpack.c.b16 %v1741, %v1738
    %v1784 = vpack.c.b16 %v1745, %v1742
    %v1785 = vpack.c.b16 %v1746, %v1743
    %v1786 = vpack.c.b16 %v1747, %v1744
    %v1787 = vpack.c.b16 %v1751, %v1748
    %v1788 = vpack.c.b16 %v1752, %v1749
    %v1789 = vpack.c.b16 %v1753, %v1750
    %v1790 = vpack.c.b16 %v1757, %v1754
    %v1791 = vpack.c.b16 %v1758, %v1755
    %v1792 = vpack.c.b16 %v1759, %v1756
    %v1793 = vpack.c.b16 %v1763, %v1760
    %v1794 = vpack.c.b16 %v1764, %v1761
    %v1795 = vpack.c.b16 %v1765, %v1762
    %v1827 = vsel %vm1557, %v1392, 0
    %1829 = vmatprep.subr.bf16.mxu0 %v1767
    %1830 = vmatpush1.bf16.msra.mxu0 %v1766
    %1831 = vmatprep.subr.bf16.mxu0 %v1770
    %1832 = vmatpush1.bf16.msra.mxu0 %v1769
    %1833 = vmatprep.subr.bf16.mxu0 %v1773
    %1834 = vmatpush1.bf16.msra.mxu0 %v1772
    %1835 = vmatprep.subr.bf16.mxu0 %v1776
    %1836 = vmatpush1.bf16.msra.mxu0 %v1775
    %1837 = vmatprep.subr.bf16.mxu0 %v1779
    %1838 = vmatpush1.bf16.msra.mxu0 %v1778
    %1839 = vmatprep.subr.bf16.mxu0 %v1782
    %1840 = vmatpush1.bf16.msra.mxu0 %v1781
    %1841 = vmatprep.subr.bf16.mxu0 %v1785
    %1842 = vmatpush1.bf16.msra.mxu0 %v1784
    %1843 = vmatprep.subr.bf16.mxu0 %v1788
    %1844 = vmatpush1.bf16.msra.mxu0 %v1787
    %1845 = vmatprep.subr.bf16.mxu0 %v1791
    %1846 = vmatpush1.bf16.msra.mxu0 %v1790
    %1847 = vmatprep.subr.bf16.mxu0 %v1794
    %1848 = vmatpush1.bf16.msra.mxu0 %v1793
    %1849 = vmatprep.subr.bf16.mxu0 0
    %1850 = vmatpush1.bf16.msra.mxu0 0
    %1851 = vmatprep.subr.bf16.mxu0 0
    %1852 = vmatpush1.bf16.msra.mxu0 0
    %1853 = vmatprep.subr.bf16.mxu0 0
    %1854 = vmatpush1.bf16.msra.mxu0 0
    %1855 = vmatprep.subr.bf16.mxu0 0
    %1856 = vmatpush1.bf16.msra.mxu0 0
    %1857 = vmatprep.subr.bf16.mxu0 0
    %1858 = vmatpush1.bf16.msra.mxu0 0
    %1859 = vmatprep.subr.bf16.mxu0 0
    %1860 = vmatpush1.bf16.msra.mxu0 0
    %1861 = vmatprep.mubr.bf16.mxu0 %v1827
    %1862 = vmatmul.mubr.bf16.gmra.mrb[0].mxu0 %v1391
    %v1863 = vpop.f32.mrb[0].mxu0
    %v1864 = vadd.f32 %v1599, %v1863
    %v1865 = vpop.f32.mrb[0].mxu0
    %v1866 = vadd.f32 %v1601, %v1865
    %v1867 = vpop.f32.mrb[0].mxu0
    %v1868 = vadd.f32 %v1603, %v1867
    %v1869 = vpop.f32.mrb[0].mxu0
    %v1870 = vadd.f32 %v1605, %v1869
    %1871 = vmatprep.mubr.bf16.mxu0 %v1559
    %1872 = vmatmul.mubr.bf16.gmra.mrb[0].mxu0 %v1393
    %v1873 = vpop.f32.mrb[0].mxu0
    %v1874 = vadd.f32 %v1609, %v1873
    %v1875 = vpop.f32.mrb[0].mxu0
    %v1876 = vadd.f32 %v1611, %v1875
    %v1877 = vpop.f32.mrb[0].mxu0
    %v1878 = vadd.f32 %v1613, %v1877
    %v1879 = vpop.f32.mrb[0].mxu0
    %v1880 = vadd.f32 %v1615, %v1879
    %1881 = vdwg.mxu0
    %1882 = vmatprep.subr.bf16.mxu0 0
    %1883 = vmatpush1.bf16.msra.mxu0 %v1768
    %1884 = vmatprep.subr.bf16.mxu0 0
    %1885 = vmatpush1.bf16.msra.mxu0 %v1771
    %1886 = vmatprep.subr.bf16.mxu0 0
    %1887 = vmatpush1.bf16.msra.mxu0 %v1774
    %1888 = vmatprep.subr.bf16.mxu0 0
    %1889 = vmatpush1.bf16.msra.mxu0 %v1777
    %1890 = vmatprep.subr.bf16.mxu0 0
    %1891 = vmatpush1.bf16.msra.mxu0 %v1780
    %1892 = vmatprep.subr.bf16.mxu0 0
    %1893 = vmatpush1.bf16.msra.mxu0 %v1783
    %1894 = vmatprep.subr.bf16.mxu0 0
    %1895 = vmatpush1.bf16.msra.mxu0 %v1786
    %1896 = vmatprep.subr.bf16.mxu0 0
    %1897 = vmatpush1.bf16.msra.mxu0 %v1789
    %1898 = vmatprep.subr.bf16.mxu0 0
    %1899 = vmatpush1.bf16.msra.mxu0 %v1792
    %1900 = vmatprep.subr.bf16.mxu0 0
    %1901 = vmatpush1.bf16.msra.mxu0 %v1795
    %1902 = vmatprep.subr.bf16.mxu0 0
    %1903 = vmatpush1.bf16.msra.mxu0 0
    %1904 = vmatprep.subr.bf16.mxu0 0
    %1905 = vmatpush1.bf16.msra.mxu0 0
    %1906 = vmatprep.subr.bf16.mxu0 0
    %1907 = vmatpush1.bf16.msra.mxu0 0
    %1908 = vmatprep.subr.bf16.mxu0 0
    %1909 = vmatpush1.bf16.msra.mxu0 0
    %1910 = vmatprep.subr.bf16.mxu0 0
    %1911 = vmatpush1.bf16.msra.mxu0 0
    %1912 = vmatprep.subr.bf16.mxu0 0
    %1913 = vmatpush1.bf16.msra.mxu0 0
    %1914 = vmatprep.mubr.bf16.mxu0 %v1827
    %1915 = vmatmul.mubr.bf16.gmra.mrb[0].mxu0 %v1391
    %v1916 = vpop.f32.mrb[0].mxu0
    %v1917 = vadd.f32 %v1652, %v1916
    %v1918 = vpop.f32.mrb[0].mxu0
    %v1919 = vpop.f32.mrb[0].mxu0
    %v1920 = vadd.f32 %v1655, %v1919
    %v1921 = vpop.f32.mrb[0].mxu0
    %1922 = vmatprep.mubr.bf16.mxu0 %v1559
    %1923 = vmatmul.mubr.bf16.gmra.mrb[0].mxu0 %v1393
    %v1924 = vpop.f32.mrb[0].mxu0
    %v1925 = vadd.f32 %v1660, %v1924
    %v1926 = vpop.f32.mrb[0].mxu0
    %v1927 = vpop.f32.mrb[0].mxu0
    %v1928 = vadd.f32 %v1663, %v1927
    %v1929 = vpop.f32.mrb[0].mxu0
    %1930 = vdwg.mxu0
    %v1932 = vlaneseq
    %v1933 = vshrl.u32 %v1932, 7
    %v1934 = vsub.s32 0, %v1933
    %v1935 = vrot.slane %v1390, %v1934
    %v1936 = vlaneseq
    %v1937 = vshrl.u32 %v1936, 7
    %v1938 = vsub.s32 1, %v1937
    %v1939 = vrot.slane %v1390, %v1938
    %v1940 = vlaneseq
    %v1941 = vshrl.u32 %v1940, 7
    %v1942 = vsub.s32 2, %v1941
    %v1943 = vrot.slane %v1390, %v1942
    %v1947 = vadd.f32 %v1864, %v1935
    %v1948 = vadd.f32 %v1866, %v1939
    %v1949 = vadd.f32 %v1917, %v1943
    %v1950 = vadd.f32 %v1868, %v1935
    %v1951 = vadd.f32 %v1870, %v1939
    %v1952 = vadd.f32 %v1920, %v1943
    %v1953 = vadd.f32 %v1874, %v1935
    %v1954 = vadd.f32 %v1876, %v1939
    %v1955 = vadd.f32 %v1925, %v1943
    %v1956 = vadd.f32 %v1878, %v1935
    %v1957 = vadd.f32 %v1880, %v1939
    %v1958 = vadd.f32 %v1928, %v1943
    %v1959 = vmax.f32 %v1947, 0.0
    %v1960 = vmax.f32 %v1948, 0.0
    %v1961 = vmax.f32 %v1949, 0.0
    %v1962 = vmax.f32 %v1950, 0.0
    %v1963 = vmax.f32 %v1951, 0.0
    %v1964 = vmax.f32 %v1952, 0.0
    %v1965 = vmax.f32 %v1953, 0.0
    %v1966 = vmax.f32 %v1954, 0.0
    %v1967 = vmax.f32 %v1955, 0.0
    %v1968 = vmax.f32 %v1956, 0.0
    %v1969 = vmax.f32 %v1957, 0.0
    %v1970 = vmax.f32 %v1958, 0.0
    %v1971 = vmax.f32 %v1959, %v1965
    %v1972 = vmax.f32 %v1960, %v1966
    %v1973 = vmax.f32 %v1961, %v1967
    %v1974 = vmax.f32 %v1962, %v1968
    %v1975 = vmax.f32 %v1963, %v1969
    %v1976 = vmax.f32 %v1964, %v1970
    %v1977 = vpack.c.bf16 %v1974, %v1971
    %v1978 = vpack.c.bf16 %v1975, %v1972
    %v1979 = vpack.c.bf16 %v1976, %v1973
    %v1980 = vld [vmem:[%s1 + $0x3c0] sm:$0xf]
    %v1981 = vld [vmem:[%s1 + $0x3cc] sm:$0xf]
    %v1982 = vld [vmem:[%s1 + $0x3d8] sm:$0xf]
    %v1983 = vld [vmem:[%s1 + $0x3e4] sm:$0xf]
    %v1984 = vld [vmem:[%s1 + $0x3f0] sm:$0xf]
    %v1985 = vld [vmem:[%s1 + $0x3fc] sm:$0xf]
    %v1986 = vld [vmem:[%s1 + $0x408] sm:$0xf]
    %v1987 = vld [vmem:[%s1 + $0x414] sm:$0xf]
    %v1988 = vld [vmem:[%s1 + $0x420] sm:$0xf]
    %v1989 = vld [vmem:[%s1 + $0x42c] sm:$0xf]
    %v1990 = vld [vmem:[%s1 + $0x438] sm:$0xf]
    %v1991 = vld [vmem:[%s1 + $0x444] sm:$0xf]
    %v1992 = vld [vmem:[%s1 + $0x450] sm:$0xf]
    %v1993 = vld [vmem:[%s1 + $0x45c] sm:$0xf]
    %v1994 = vld [vmem:[%s1 + $0x468] sm:$0xf]
    %v1995 = vld [vmem:[%s1 + $0x474] sm:$0xf]
    %v1996 = vld [vmem:[%s1 + $0x480] sm:$0xf]
    %v1997 = vld [vmem:[%s1 + $0x48c] sm:$0xf]
    %v1998 = vld [vmem:[%s1 + $0x498] sm:$0xf]
    %v1999 = vld [vmem:[%s1 + $0x4a4] sm:$0xf]
    %v2000 = vld [vmem:[%s1 + $0x4b0] sm:$0xf]
    %v2001 = vld [vmem:[%s1 + $0x4bc] sm:$0xf]
    %v2002 = vld [vmem:[%s1 + $0x4c8] sm:$0xf]
    %v2003 = vld [vmem:[%s1 + $0x4d4] sm:$0xf]
    %v2004 = vld [vmem:[%s1 + $0x4e0] sm:$0xf]
    %v2005 = vld [vmem:[%s1 + $0x4ec] sm:$0xf]
    %v2006 = vld [vmem:[%s1 + $0x4f8] sm:$0xf]
    %v2007 = vld [vmem:[%s1 + $0x504] sm:$0xf]
    %v2008 = vld [vmem:[%s1 + $0x510] sm:$0xf]
    %v2009 = vld [vmem:[%s1 + $0x51c] sm:$0xf]
    %v2010 = vld [vmem:[%s1 + $0x528] sm:$0xf]
    %v2011 = vld [vmem:[%s1 + $0x534] sm:$0xf]
    %v2012 = vld [vmem:[%s1 + $0x540] sm:$0xf]
    %v2013 = vld [vmem:[%s1 + $0x54c] sm:$0xf]
    %v2014 = vld [vmem:[%s1 + $0x558] sm:$0xf]
    %v2015 = vld [vmem:[%s1 + $0x564] sm:$0xf]
    %v2016 = vld [vmem:[%s1 + $0x570] sm:$0xf]
    %v2017 = vld [vmem:[%s1 + $0x57c] sm:$0xf]
    %v2018 = vld [vmem:[%s1 + $0x588] sm:$0xf]
    %v2019 = vld [vmem:[%s1 + $0x594] sm:$0xf]
    %v2020 = vld [vmem:[%s2 + $0x5] ss:$0 sm:$0xff]
    %v2061 = vunpack.c.l.b16 %v1980
    %v2062 = vunpack.c.l.b16 %v1981
    %v2063 = vunpack.c.l.b16 %v1982
    %v2064 = vunpack.c.l.b16 %v1983
    %v2065 = vunpack.c.l.b16 %v1984
    %v2066 = vunpack.c.l.b16 %v1985
    %v2067 = vunpack.c.l.b16 %v1986
    %v2068 = vunpack.c.l.b16 %v1987
    %v2069 = vunpack.c.l.b16 %v1988
    %v2070 = vunpack.c.l.b16 %v1989
    %v2071 = vunpack.c.l.b16 %v1990
    %v2072 = vunpack.c.l.b16 %v1991
    %v2073 = vunpack.c.l.b16 %v1992
    %v2074 = vunpack.c.l.b16 %v1993
    %v2075 = vunpack.c.l.b16 %v1994
    %v2076 = vunpack.c.l.b16 %v1995
    %v2077 = vunpack.c.l.b16 %v1996
    %v2078 = vunpack.c.l.b16 %v1997
    %v2079 = vunpack.c.l.b16 %v1998
    %v2080 = vunpack.c.l.b16 %v1999
    %v2081 = vunpack.c.l.b16 %v2000
    %v2082 = vunpack.c.l.b16 %v2001
    %v2083 = vunpack.c.l.b16 %v2002
    %v2084 = vunpack.c.l.b16 %v2003
    %v2085 = vunpack.c.l.b16 %v2004
    %v2086 = vunpack.c.l.b16 %v2005
    %v2087 = vunpack.c.l.b16 %v2006
    %v2088 = vunpack.c.l.b16 %v2007
    %v2089 = vunpack.c.l.b16 %v2008
    %v2090 = vunpack.c.l.b16 %v2009
    %v2091 = vunpack.c.l.b16 %v2010
    %v2092 = vunpack.c.l.b16 %v2011
    %v2093 = vunpack.c.l.b16 %v2012
    %v2094 = vunpack.c.l.b16 %v2013
    %v2095 = vunpack.c.l.b16 %v2014
    %v2096 = vunpack.c.l.b16 %v2015
    %v2097 = vunpack.c.l.b16 %v2016
    %v2098 = vunpack.c.l.b16 %v2017
    %v2099 = vunpack.c.l.b16 %v2018
    %v2100 = vunpack.c.l.b16 %v2019
    %v2101 = vpack.c.b16 %v2062, %v2061
    %v2102 = vpack.c.b16 %v2064, %v2063
    %v2103 = vpack.c.b16 %v2066, %v2065
    %v2104 = vpack.c.b16 %v2068, %v2067
    %v2105 = vpack.c.b16 %v2070, %v2069
    %v2106 = vpack.c.b16 %v2072, %v2071
    %v2107 = vpack.c.b16 %v2074, %v2073
    %v2108 = vpack.c.b16 %v2076, %v2075
    %v2109 = vpack.c.b16 %v2078, %v2077
    %v2110 = vpack.c.b16 %v2080, %v2079
    %v2111 = vpack.c.b16 %v2082, %v2081
    %v2112 = vpack.c.b16 %v2084, %v2083
    %v2113 = vpack.c.b16 %v2086, %v2085
    %v2114 = vpack.c.b16 %v2088, %v2087
    %v2115 = vpack.c.b16 %v2090, %v2089
    %v2116 = vpack.c.b16 %v2092, %v2091
    %v2117 = vpack.c.b16 %v2094, %v2093
    %v2118 = vpack.c.b16 %v2096, %v2095
    %v2119 = vpack.c.b16 %v2098, %v2097
    %v2120 = vpack.c.b16 %v2100, %v2099
    %vm2141 = vcmask 523264
    %v2143 = vsel %vm2141, %v1979, 0
    %2145 = vmatprep.subr.bf16.mxu0 0
    %2146 = vmatpush1.bf16.msra.mxu0 %v2101
    %2147 = vmatprep.subr.bf16.mxu0 0
    %2148 = vmatpush1.bf16.msra.mxu0 %v2102
    %2149 = vmatprep.subr.bf16.mxu0 0
    %2150 = vmatpush1.bf16.msra.mxu0 %v2103
    %2151 = vmatprep.subr.bf16.mxu0 0
    %2152 = vmatpush1.bf16.msra.mxu0 %v2104
    %2153 = vmatprep.subr.bf16.mxu0 0
    %2154 = vmatpush1.bf16.msra.mxu0 %v2105
    %2155 = vmatprep.subr.bf16.mxu0 0
    %2156 = vmatpush1.bf16.msra.mxu0 %v2106
    %2157 = vmatprep.subr.bf16.mxu0 0
    %2158 = vmatpush1.bf16.msra.mxu0 %v2107
    %2159 = vmatprep.subr.bf16.mxu0 0
    %2160 = vmatpush1.bf16.msra.mxu0 %v2108
    %2161 = vmatprep.subr.bf16.mxu0 0
    %2162 = vmatpush1.bf16.msra.mxu0 %v2109
    %2163 = vmatprep.subr.bf16.mxu0 0
    %2164 = vmatpush1.bf16.msra.mxu0 %v2110
    %2165 = vmatprep.subr.bf16.mxu0 0
    %2166 = vmatpush1.bf16.msra.mxu0 %v2111
    %2167 = vmatprep.subr.bf16.mxu0 0
    %2168 = vmatpush1.bf16.msra.mxu0 %v2112
    %2169 = vmatprep.subr.bf16.mxu0 0
    %2170 = vmatpush1.bf16.msra.mxu0 %v2113
    %2171 = vmatprep.subr.bf16.mxu0 0
    %2172 = vmatpush1.bf16.msra.mxu0 %v2114
    %2173 = vmatprep.subr.bf16.mxu0 0
    %2174 = vmatpush1.bf16.msra.mxu0 %v2115
    %2175 = vmatprep.subr.bf16.mxu0 0
    %2176 = vmatpush1.bf16.msra.mxu0 %v2116
    %2177 = vmatprep.mubr.bf16.mxu0 %v1978
    %2178 = vmatmul.mubr.bf16.gmra.mrb[0].mxu0 %v1977
    %v2179 = vpop.f32.mrb[0].mxu0
    %v2180 = vadd.f32 %v2020, %v2179
    %v2181 = vpop.f32.mrb[0].mxu0
    %v2182 = vpop.f32.mrb[0].mxu0
    %v2183 = vadd.f32 %v2020, %v2182
    %v2184 = vpop.f32.mrb[0].mxu0
    %2185 = vdwg.mxu0
    %2186 = vmatprep.subr.bf16.mxu0 0
    %2187 = vmatpush1.bf16.msra.mxu0 %v2117
    %2188 = vmatprep.subr.bf16.mxu0 0
    %2189 = vmatpush1.bf16.msra.mxu0 %v2118
    %2190 = vmatprep.subr.bf16.mxu0 0
    %2191 = vmatpush1.bf16.msra.mxu0 %v2119
    %2192 = vmatprep.subr.bf16.mxu0 0
    %2193 = vmatpush1.bf16.msra.mxu0 %v2120
    %2194 = vmatprep.subr.bf16.mxu0 0
    %2195 = vmatpush1.bf16.msra.mxu0 0
    %2196 = vmatprep.subr.bf16.mxu0 0
    %2197 = vmatpush1.bf16.msra.mxu0 0
    %2198 = vmatprep.subr.bf16.mxu0 0
    %2199 = vmatpush1.bf16.msra.mxu0 0
    %2200 = vmatprep.subr.bf16.mxu0 0
    %2201 = vmatpush1.bf16.msra.mxu0 0
    %2202 = vmatprep.subr.bf16.mxu0 0
    %2203 = vmatpush1.bf16.msra.mxu0 0
    %2204 = vmatprep.subr.bf16.mxu0 0
    %2205 = vmatpush1.bf16.msra.mxu0 0
    %2206 = vmatprep.subr.bf16.mxu0 0
    %2207 = vmatpush1.bf16.msra.mxu0 0
    %2208 = vmatprep.subr.bf16.mxu0 0
    %2209 = vmatpush1.bf16.msra.mxu0 0
    %2210 = vmatprep.subr.bf16.mxu0 0
    %2211 = vmatpush1.bf16.msra.mxu0 0
    %2212 = vmatprep.subr.bf16.mxu0 0
    %2213 = vmatpush1.bf16.msra.mxu0 0
    %2214 = vmatprep.subr.bf16.mxu0 0
    %2215 = vmatpush1.bf16.msra.mxu0 0
    %2216 = vmatprep.subr.bf16.mxu0 0
    %2217 = vmatpush1.bf16.msra.mxu0 0
    %2218 = vmatprep.mubr.bf16.mxu0 0
    %2219 = vmatmul.mubr.bf16.gmra.mrb[0].mxu0 %v2143
    %v2220 = vpop.f32.mrb[0].mxu0
    %v2221 = vadd.f32 %v2180, %v2220
    %v2222 = vpop.f32.mrb[0].mxu0
    %v2223 = vpop.f32.mrb[0].mxu0
    %v2224 = vadd.f32 %v2183, %v2223
    %v2225 = vpop.f32.mrb[0].mxu0
    %2226 = vdwg.mxu0
    %v2227 = vmax.f32 %v2221, 0.0
    %v2228 = vmax.f32 %v2224, 0.0
    %v2229 = vpack.c.bf16 %v2228, %v2227
    %v2230 = vld [vmem:[%s1 + $0x5a0] sm:$0xf]
    %v2231 = vld [vmem:[%s1 + $0x5ac] sm:$0xf]
    %v2232 = vld [vmem:[%s1 + $0x5b8] sm:$0xf]
    %v2233 = vld [vmem:[%s2 + $0x6] ss:$0 sm:$0xff]
    %v2237 = vunpack.c.l.b16 %v2230
    %v2238 = vunpack.c.l.b16 %v2231
    %v2239 = vunpack.c.l.b16 %v2232
    %v2240 = vpack.c.b16 %v2238, %v2237
    %v2241 = vpack.c.b16 %v2239, %v2239
    %v2244 = vsel %vm409, %v2229, 0
    %v2247 = vsel %vm434, %v2241, 0
    %2249 = vmatprep.subr.bf16.mxu0 0
    %2250 = vmatpush1.bf16.msra.mxu0 %v2240
    %2251 = vmatprep.subr.bf16.mxu0 0
    %2252 = vmatpush1.bf16.msra.mxu0 %v2247
    %2253 = vmatprep.subr.bf16.mxu0 0
    %2254 = vmatpush1.bf16.msra.mxu0 0
    %2255 = vmatprep.subr.bf16.mxu0 0
    %2256 = vmatpush1.bf16.msra.mxu0 0
    %2257 = vmatprep.subr.bf16.mxu0 0
    %2258 = vmatpush1.bf16.msra.mxu0 0
    %2259 = vmatprep.subr.bf16.mxu0 0
    %2260 = vmatpush1.bf16.msra.mxu0 0
    %2261 = vmatprep.subr.bf16.mxu0 0
    %2262 = vmatpush1.bf16.msra.mxu0 0
    %2263 = vmatprep.subr.bf16.mxu0 0
    %2264 = vmatpush1.bf16.msra.mxu0 0
    %2265 = vmatprep.subr.bf16.mxu0 0
    %2266 = vmatpush1.bf16.msra.mxu0 0
    %2267 = vmatprep.subr.bf16.mxu0 0
    %2268 = vmatpush1.bf16.msra.mxu0 0
    %2269 = vmatprep.subr.bf16.mxu0 0
    %2270 = vmatpush1.bf16.msra.mxu0 0
    %2271 = vmatprep.subr.bf16.mxu0 0
    %2272 = vmatpush1.bf16.msra.mxu0 0
    %2273 = vmatprep.subr.bf16.mxu0 0
    %2274 = vmatpush1.bf16.msra.mxu0 0
    %2275 = vmatprep.subr.bf16.mxu0 0
    %2276 = vmatpush1.bf16.msra.mxu0 0
    %2277 = vmatprep.subr.bf16.mxu0 0
    %2278 = vmatpush1.bf16.msra.mxu0 0
    %2279 = vmatprep.subr.bf16.mxu0 0
    %2280 = vmatpush1.bf16.msra.mxu0 0
    %2281 = vmatprep.mubr.bf16.mxu0 0
    %2282 = vmatmul.mubr.bf16.gmra.mrb[0].mxu0 %v2244
    %v2283 = vpop.f32.mrb[0].mxu0
    %v2284 = vadd.f32 %v2233, %v2283
    %v2285 = vpop.f32.mrb[0].mxu0
    %v2286 = vpop.f32.mrb[0].mxu0
    %v2287 = vadd.f32 %v2233, %v2286
    %v2288 = vpop.f32.mrb[0].mxu0
    %2289 = vdwg.mxu0
    %v2290 = vmax.f32 %v2284, 0.0
    %v2291 = vmax.f32 %v2287, 0.0
    %v2292 = vpack.c.bf16 %v2291, %v2290
    %v2293 = vld [vmem:[%s1 + $0x5c4] sm:$0xf]
    %v2294 = vld [vmem:[%s1 + $0x5d0] sm:$0xf]
    %v2295 = vld [vmem:[%s1 + $0x5dc] sm:$0xf]
    %v2296 = vld [vmem:[%s1 + $0x5e8] sm:$0xf]
    %v2297 = vld [vmem:[%s1 + $0x5f4] sm:$0xf]
    %v2298 = vld [vmem:[%s2 + $0x7] ss:$0 sm:$0xff]
    %v2304 = vunpack.c.l.b16 %v2293
    %v2305 = vunpack.c.l.b16 %v2294
    %v2306 = vunpack.c.l.b16 %v2295
    %v2307 = vunpack.c.l.b16 %v2296
    %v2308 = vunpack.c.l.b16 %v2297
    %v2309 = vpack.c.b16 %v2305, %v2304
    %v2310 = vpack.c.b16 %v2307, %v2306
    %v2311 = vpack.c.b16 %v2308, %v2308
    %v2315 = vsel %vm726, %v2292, 0
    %v2318 = vsel %vm434, %v2311, 0
    %2320 = vmatprep.subr.bf16.mxu0 0
    %2321 = vmatpush1.bf16.msra.mxu0 %v2309
    %2322 = vmatprep.subr.bf16.mxu0 0
    %2323 = vmatpush1.bf16.msra.mxu0 %v2310
    %2324 = vmatprep.subr.bf16.mxu0 0
    %2325 = vmatpush1.bf16.msra.mxu0 %v2318
    %2326 = vmatprep.subr.bf16.mxu0 0
    %2327 = vmatpush1.bf16.msra.mxu0 0
    %2328 = vmatprep.subr.bf16.mxu0 0
    %2329 = vmatpush1.bf16.msra.mxu0 0
    %2330 = vmatprep.subr.bf16.mxu0 0
    %2331 = vmatpush1.bf16.msra.mxu0 0
    %2332 = vmatprep.subr.bf16.mxu0 0
    %2333 = vmatpush1.bf16.msra.mxu0 0
    %2334 = vmatprep.subr.bf16.mxu0 0
    %2335 = vmatpush1.bf16.msra.mxu0 0
    %2336 = vmatprep.subr.bf16.mxu0 0
    %2337 = vmatpush1.bf16.msra.mxu0 0
    %2338 = vmatprep.subr.bf16.mxu0 0
    %2339 = vmatpush1.bf16.msra.mxu0 0
    %2340 = vmatprep.subr.bf16.mxu0 0
    %2341 = vmatpush1.bf16.msra.mxu0 0
    %2342 = vmatprep.subr.bf16.mxu0 0
    %2343 = vmatpush1.bf16.msra.mxu0 0
    %2344 = vmatprep.subr.bf16.mxu0 0
    %2345 = vmatpush1.bf16.msra.mxu0 0
    %2346 = vmatprep.subr.bf16.mxu0 0
    %2347 = vmatpush1.bf16.msra.mxu0 0
    %2348 = vmatprep.subr.bf16.mxu0 0
    %2349 = vmatpush1.bf16.msra.mxu0 0
    %2350 = vmatprep.subr.bf16.mxu0 0
    %2351 = vmatpush1.bf16.msra.mxu0 0
    %2352 = vmatprep.mubr.bf16.mxu0 0
    %2353 = vmatmul.mubr.bf16.gmra.mrb[0].mxu0 %v2315
    %v2354 = vpop.f32.mrb[0].mxu0
    %v2355 = vadd.f32 %v2298, %v2354
    %v2356 = vpop.f32.mrb[0].mxu0
    %v2357 = vpop.f32.mrb[0].mxu0
    %v2358 = vadd.f32 %v2298, %v2357
    %v2359 = vpop.f32.mrb[0].mxu0
    %2360 = vdwg.mxu0
    %2361 = vst [vmem:[#allocation2] sm:$0xff] %v2355
    %2362 = vst [vmem:[#allocation2 + $0x8] sm:$0xff] %v2358
    // Predicated region
    $region14: #{tpu_custom_call.1} parent=1 // pred_check
      _
    $region15: #{tpu_custom_call.1} parent=1 // pred_check_branch
      %2364 = sbr.rel (0) target = $region17
    $region16: #{tpu_custom_call.1} parent=1 // pred_region
      %s2366 = ssub.s32 256, 256
      %2367 = vsyncadd [#allocation3], %s2366
      %s2368 = sshll.u32 [#allocation2], 4
      %s2369 = int_to_ptr.vmem [resolvable:$true] %s2368
      %2374 = dma.vmem_to_hbm [thread:$0]  %s2369, 256, %s3, [#allocation3], 128, 128, 8
    $region17: #{tpu_custom_call.1} parent=1 // pred_fallthru
      _
    // Predicated region
    $region18: #{tpu_custom_call.1} parent=1 // pred_check
      _
    $region19: #{tpu_custom_call.1} parent=1 // pred_check_branch
      %2376 = sbr.rel (0) target = $region21
    $region20: #{tpu_custom_call.1} parent=1 // pred_region
      %2377 = dma.done [#allocation3], 256
    $region21: #{tpu_custom_call.1} parent=1 // pred_fallthru
      _
    %2378 = vsyncpa [#allocation3], 1

</llo_original>
